<compile_context>
chip_gen: v5e
topology: v5e:2x2
jax: 0.10.0
libtpu: 0.0.40
codegen_flags: <defaults>
</compile_context>

<pallas_src>
import functools

import jax
import jax.numpy as jnp
import numpy as np
from jax import lax
from jax.experimental import pallas as pl
from jax.experimental.pallas import tpu as pltpu

D = 64                 # data dim (fixed by the module)
NUM_CLASSES = 17       # fixed by the module
DPAD = 128             # lane-aligned per-class slice width inside the kernel
OUT_W = 128            # lane-dense packed output width
EPS = 1e-12
LOG_EPS = float(np.log(EPS))
LOG_2PI = float(np.log(2.0 * np.pi))


def _leaky_relu(h):
    # nn.LeakyReLU default negative_slope = 0.01
    return jnp.where(h > 0, h, 0.01 * h)


def vae_kernel(x_ref, eps_ref,
               w1e_ref, b1e_ref, w2e_ref, b2e_ref, w3e_ref, b3e_ref,
               w1d_ref, b1d_ref, w2d_ref, b2d_ref, w3d_ref, b3d_ref,
               out_ref, *, L, C, Dpad):
    x = x_ref[...]          # (TB, Dpad)  class indices as f32, padded lanes hold -1
    eps = eps_ref[...]      # (TB, L)

    # ---------------- encoder MLP ----------------
    # (w1e rows beyond D are zero, so the -1 padding of x contributes nothing)
    h = _leaky_relu(jnp.dot(x, w1e_ref[...], preferred_element_type=jnp.float32) + b1e_ref[...])
    h = _leaky_relu(jnp.dot(h, w2e_ref[...], preferred_element_type=jnp.float32) + b2e_ref[...])
    h = jnp.dot(h, w3e_ref[...], preferred_element_type=jnp.float32) + b3e_ref[...]   # (TB, 2L)

    mu = h[:, :L]
    log_var = h[:, L:]
    std = jnp.exp(0.5 * log_var)
    z = mu + std * eps                                   # use_rep = True reparameterization

    # -------- encoder log prob: log N(z; mu, diag(exp(log_var))) --------
    # exact identity: (z - mu)^2 / exp(log_var) == eps^2
    enc_lp = (-0.5 * L * LOG_2PI
              - 0.5 * jnp.sum(log_var, axis=-1, keepdims=True)
              - 0.5 * jnp.sum(eps * eps, axis=-1, keepdims=True))

    # -------- prior log prob: log N(z; 0, I) --------
    prior_lp = -0.5 * L * LOG_2PI - 0.5 * jnp.sum(z * z, axis=-1, keepdims=True)

    # ---------------- decoder MLP ----------------
    hd = _leaky_relu(jnp.dot(z, w1d_ref[...], preferred_element_type=jnp.float32) + b1d_ref[...])
    hd = _leaky_relu(jnp.dot(hd, w2d_ref[...], preferred_element_type=jnp.float32) + b2d_ref[...])
    logits = jnp.dot(hd, w3d_ref[...], preferred_element_type=jnp.float32) + b3d_ref[...]  # (TB, C*Dpad)

    # ----- categorical log-likelihood via masked log-softmax over the class axis -----
    # class slices are 128-lane aligned; pass 1: running max, pass 2: sum-exp + selected logit.
    m = logits[:, 0:Dpad]
    for c in range(1, C):
        m = jnp.maximum(m, logits[:, c * Dpad:(c + 1) * Dpad])

    denom = jnp.zeros_like(m)
    sel = jnp.zeros_like(m)
    for c in range(C):
        lc = logits[:, c * Dpad:(c + 1) * Dpad]
        denom = denom + jnp.exp(lc - m)
        sel = sel + jnp.where(x == float(c), lc, 0.0)    # one-hot selected logit

    logp_sel = sel - m - jnp.log(denom)                  # log p[b, d, x[b,d]]
    logp_sel = jnp.maximum(logp_sel, LOG_EPS)            # matches reference clamp(p, EPS, .)
    valid = (x >= 0.0).astype(jnp.float32)               # 0 on padded lanes
    dec_lp = jnp.sum(valid * logp_sel, axis=-1, keepdims=True)

    # ---------------- pack into one lane-dense output slab ----------------
    lane = lax.broadcasted_iota(jnp.int32, out_ref.shape, 1)
    out_ref[...] = jnp.where(lane == 0, enc_lp,
                             jnp.where(lane == 1, dec_lp,
                                       jnp.where(lane == 2, prior_lp, 0.0)))


def vae_forward(x, eps, params, *, L, M, C=NUM_CLASSES, tb=None, d_pad=DPAD):
    """Returns (enc_log_p, dec_log_p, prior_log_p), each shape [B]."""
    B, Dd = x.shape
    if tb is None:
        tb = B if B <= 256 else 256
    assert B % tb == 0 and tb % 8 == 0

    (w1e, b1e, w2e, b2e, w3e, b3e, w1d, b1d, w2d, b2d, w3d, b3d) = params

    # Pad x with a -1 sentinel to d_pad lanes; pad w1e with zero rows so the encoder
    # matmul is unchanged.  Pad each class-major column block of the last decoder layer
    # from Dd to d_pad with zeros (those lanes are masked out of the likelihood sum).
    x_pad = jnp.pad(x, ((0, 0), (0, d_pad - Dd)), constant_values=-1.0)
    w1e_pad = jnp.pad(w1e, ((0, d_pad - Dd), (0, 0)))
    w3d_pad = jnp.pad(w3d.reshape(M, C, Dd),
                      ((0, 0), (0, 0), (0, d_pad - Dd))).reshape(M, C * d_pad)
    b3d_pad = jnp.pad(b3d.reshape(1, C, Dd),
                      ((0, 0), (0, 0), (0, d_pad - Dd))).reshape(1, C * d_pad)

    kern = functools.partial(vae_kernel, L=L, C=C, Dpad=d_pad)

    def full(shape):
        return pl.BlockSpec(shape, lambda i: (0, 0))

    in_specs = [
        pl.BlockSpec((tb, d_pad), lambda i: (i, 0)),    # x (padded)
        pl.BlockSpec((tb, L), lambda i: (i, 0)),        # eps
        full((d_pad, M)), full((1, M)),                 # encoder layer 1 (row-padded)
        full((M, M)), full((1, M)),                     # encoder layer 2
        full((M, 2 * L)), full((1, 2 * L)),             # encoder layer 3
        full((L, M)), full((1, M)),                     # decoder layer 1
        full((M, M)), full((1, M)),                     # decoder layer 2
        full((M, C * d_pad)), full((1, C * d_pad)),     # decoder layer 3 (class-major, padded)
    ]
    out_specs = pl.BlockSpec((tb, OUT_W), lambda i: (i, 0))
    out_shape = jax.ShapeDtypeStruct((B, OUT_W), jnp.float32)

    packed = pl.pallas_call(
        kern,
        grid=(B // tb,),
        in_specs=in_specs,
        out_specs=out_specs,
        out_shape=out_shape,
        compiler_params=pltpu.CompilerParams(dimension_semantics=("parallel",)),
    )(x_pad, eps, w1e_pad, b1e, w2e, b2e, w3e, b3e,
      w1d, b1d, w2d, b2d, w3d_pad, b3d_pad)
    return packed[:, 0], packed[:, 1], packed[:, 2]


def init_params(key, L, M, C, Dd):
    """Deterministic synthetic weights (torch.nn.Linear-style uniform init)."""
    def lin(k, fan_in, fan_out):
        k1, k2 = jax.random.split(k)
        bound = 1.0 / np.sqrt(fan_in)
        W = jax.random.uniform(k1, (fan_in, fan_out), jnp.float32, -bound, bound)
        b = jax.random.uniform(k2, (1, fan_out), jnp.float32, -bound, bound)
        return W, b

    keys = jax.random.split(key, 6)
    w1e, b1e = lin(keys[0], Dd, M)
    w2e, b2e = lin(keys[1], M, M)
    w3e, b3e = lin(keys[2], M, 2 * L)
    w1d, b1d = lin(keys[3], L, M)
    w2d, b2d = lin(keys[4], M, M)
    w3d, b3d = lin(keys[5], M, C * Dd)   # columns laid out class-major: col = c*D + d
    return (w1e, b1e, w2e, b2e, w3e, b3e, w1d, b1d, w2d, b2d, w3d, b3d)


def vae_reference(x, eps, params, *, L, C):
    """Pure-JAX reference mirroring the PyTorch forward (class-major weight layout)."""
    (w1e, b1e, w2e, b2e, w3e, b3e, w1d, b1d, w2d, b2d, w3d, b3d) = params
    leaky = lambda h: jnp.where(h > 0, h, 0.01 * h)
    h = leaky(x @ w1e + b1e)
    h = leaky(h @ w2e + b2e)
    h = h @ w3e + b3e
    mu, log_var = h[:, :L], h[:, L:]
    z = mu + jnp.exp(0.5 * log_var) * eps
    enc = (-0.5 * L * LOG_2PI - 0.5 * jnp.sum(log_var, -1)
           - 0.5 * jnp.sum((z - mu) ** 2 / jnp.exp(log_var), -1))
    prior = -0.5 * L * LOG_2PI - 0.5 * jnp.sum(z ** 2, -1)
    hd = leaky(z @ w1d + b1d)
    hd = leaky(hd @ w2d + b2d)
    logits = hd @ w3d + b3d                                  # (B, C*D), class-major
    B, Dd = x.shape
    logits3 = logits.reshape(B, C, Dd).transpose(0, 2, 1)    # (B, D, C)
    p = jax.nn.softmax(logits3, axis=-1)
    logp = jnp.log(jnp.clip(p, EPS, 1.0 - EPS))
    onehot = jax.nn.one_hot(x.astype(jnp.int32), C, dtype=jnp.float32)
    dec = jnp.sum(onehot * logp, axis=(-1, -2))
    return enc, dec, prior


if __name__ == "__main__":
    # small, module-consistent shapes: D=64 fixed, latent_dim L=16, cell_dim M=32
    B, L, M, C = 16, 16, 32, NUM_CLASSES

    key = jax.random.PRNGKey(0)
    k_par, k_x, k_eps = jax.random.split(key, 3)

    params = init_params(k_par, L, M, C, D)
    # x holds class indices (as floats) — fed to the encoder and used as one-hot targets
    x = jax.random.randint(k_x, (B, D), 0, C).astype(jnp.float32)
    # TODO(synk): torch.randn_like noise has no in-kernel equivalent with identical RNG;
    # eps is sampled host-side with jax.random and passed into the kernel.
    eps = jax.random.normal(k_eps, (B, L), dtype=jnp.float32)

    enc_lp, dec_lp, prior_lp = vae_forward(x, eps, params, L=L, M=M, C=C)
    jax.block_until_ready((enc_lp, dec_lp, prior_lp))

    enc_r, dec_r, prior_r = vae_reference(x, eps, params, L=L, C=C)
    np.testing.assert_allclose(np.asarray(enc_lp), np.asarray(enc_r), rtol=1e-3, atol=5e-2)
    np.testing.assert_allclose(np.asarray(dec_lp), np.asarray(dec_r), rtol=1e-3, atol=5e-2)
    np.testing.assert_allclose(np.asarray(prior_lp), np.asarray(prior_r), rtol=1e-3, atol=5e-2)

    print("KERNEL_OK")
</pallas_src>

<mosaic_0001>
module attributes {stable_mosaic.version = 11 : i64} {
  func.func @vae_kernel(%arg0: i32, %arg1: memref<16x128xf32, #tpu.memory_space<vmem>>, %arg2: memref<16x16xf32, #tpu.memory_space<vmem>>, %arg3: memref<128x32xf32, #tpu.memory_space<vmem>>, %arg4: memref<1x32xf32, #tpu.memory_space<vmem>>, %arg5: memref<32x32xf32, #tpu.memory_space<vmem>>, %arg6: memref<1x32xf32, #tpu.memory_space<vmem>>, %arg7: memref<32x32xf32, #tpu.memory_space<vmem>>, %arg8: memref<1x32xf32, #tpu.memory_space<vmem>>, %arg9: memref<16x32xf32, #tpu.memory_space<vmem>>, %arg10: memref<1x32xf32, #tpu.memory_space<vmem>>, %arg11: memref<32x32xf32, #tpu.memory_space<vmem>>, %arg12: memref<1x32xf32, #tpu.memory_space<vmem>>, %arg13: memref<32x2176xf32, #tpu.memory_space<vmem>>, %arg14: memref<1x2176xf32, #tpu.memory_space<vmem>>, %arg15: memref<16x128xf32, #tpu.memory_space<vmem>>) attributes {dimension_semantics = [#tpu.dimension_semantics<parallel>], iteration_bounds = array<i64: 1>, scalar_prefetch = 0 : i64, scratch_operands = 0 : i64, tpu.core_type = #tpu.core_type<tc>, window_params = [{transform_indices = @transform_0, window_bounds = array<i64: 16, 128>}, {transform_indices = @transform_1, window_bounds = array<i64: 16, 16>}, {pipeline_mode = #tpu.pipeline_mode<synchronous>, transform_indices = @transform_2, window_bounds = array<i64: 128, 32>}, {pipeline_mode = #tpu.pipeline_mode<synchronous>, transform_indices = @transform_3, window_bounds = array<i64: 1, 32>}, {pipeline_mode = #tpu.pipeline_mode<synchronous>, transform_indices = @transform_4, window_bounds = array<i64: 32, 32>}, {pipeline_mode = #tpu.pipeline_mode<synchronous>, transform_indices = @transform_5, window_bounds = array<i64: 1, 32>}, {pipeline_mode = #tpu.pipeline_mode<synchronous>, transform_indices = @transform_6, window_bounds = array<i64: 32, 32>}, {pipeline_mode = #tpu.pipeline_mode<synchronous>, transform_indices = @transform_7, window_bounds = array<i64: 1, 32>}, {pipeline_mode = #tpu.pipeline_mode<synchronous>, transform_indices = @transform_8, window_bounds = array<i64: 16, 32>}, {pipeline_mode = #tpu.pipeline_mode<synchronous>, transform_indices = @transform_9, window_bounds = array<i64: 1, 32>}, {pipeline_mode = #tpu.pipeline_mode<synchronous>, transform_indices = @transform_10, window_bounds = array<i64: 32, 32>}, {pipeline_mode = #tpu.pipeline_mode<synchronous>, transform_indices = @transform_11, window_bounds = array<i64: 1, 32>}, {pipeline_mode = #tpu.pipeline_mode<synchronous>, transform_indices = @transform_12, window_bounds = array<i64: 32, 2176>}, {pipeline_mode = #tpu.pipeline_mode<synchronous>, transform_indices = @transform_13, window_bounds = array<i64: 1, 2176>}, {transform_indices = @transform_14, window_bounds = array<i64: 16, 128>}]} {
    %c0 = arith.constant 0 : index
    %c0_0 = arith.constant 0 : index
    %0 = vector.load %arg1[%c0, %c0_0] : memref<16x128xf32, #tpu.memory_space<vmem>>, vector<16x128xf32>
    %c0_1 = arith.constant 0 : index
    %c0_2 = arith.constant 0 : index
    %1 = vector.load %arg2[%c0_1, %c0_2] : memref<16x16xf32, #tpu.memory_space<vmem>>, vector<16x16xf32>
    %c0_3 = arith.constant 0 : index
    %c0_4 = arith.constant 0 : index
    %2 = vector.load %arg3[%c0_3, %c0_4] : memref<128x32xf32, #tpu.memory_space<vmem>>, vector<128x32xf32>
    %cst = arith.constant dense<0.000000e+00> : vector<16x32xf32>
    %3 = tpu.matmul %0, %2, %cst {dimension_numbers = #tpu.dot_dimension_numbers<[1], [0], [0], [1], [0, 0, 1, 1], [], []>} : vector<16x128xf32>, vector<128x32xf32>, vector<16x32xf32> -> vector<16x32xf32>
    %c0_5 = arith.constant 0 : index
    %c0_6 = arith.constant 0 : index
    %4 = vector.load %arg4[%c0_5, %c0_6] : memref<1x32xf32, #tpu.memory_space<vmem>>, vector<1x32xf32>
    %5 = vector.broadcast %4 : vector<1x32xf32> to vector<16x32xf32>
    %6 = arith.addf %3, %5 : vector<16x32xf32>
    %cst_7 = arith.constant 0.000000e+00 : f32
    %7 = vector.broadcast %cst_7 : f32 to vector<16x32xf32>
    %8 = arith.cmpf ogt, %6, %7 : vector<16x32xf32>
    %cst_8 = arith.constant 0.00999999977 : f32
    %9 = vector.broadcast %cst_8 : f32 to vector<16x32xf32>
    %10 = arith.mulf %9, %6 : vector<16x32xf32>
    %11 = arith.select %8, %6, %10 : vector<16x32xi1>, vector<16x32xf32>
    %c0_9 = arith.constant 0 : index
    %c0_10 = arith.constant 0 : index
    %12 = vector.load %arg5[%c0_9, %c0_10] : memref<32x32xf32, #tpu.memory_space<vmem>>, vector<32x32xf32>
    %cst_11 = arith.constant dense<0.000000e+00> : vector<16x32xf32>
    %13 = tpu.matmul %11, %12, %cst_11 {dimension_numbers = #tpu.dot_dimension_numbers<[1], [0], [0], [1], [0, 0, 1, 1], [], []>} : vector<16x32xf32>, vector<32x32xf32>, vector<16x32xf32> -> vector<16x32xf32>
    %c0_12 = arith.constant 0 : index
    %c0_13 = arith.constant 0 : index
    %14 = vector.load %arg6[%c0_12, %c0_13] : memref<1x32xf32, #tpu.memory_space<vmem>>, vector<1x32xf32>
    %15 = vector.broadcast %14 : vector<1x32xf32> to vector<16x32xf32>
    %16 = arith.addf %13, %15 : vector<16x32xf32>
    %cst_14 = arith.constant 0.000000e+00 : f32
    %17 = vector.broadcast %cst_14 : f32 to vector<16x32xf32>
    %18 = arith.cmpf ogt, %16, %17 : vector<16x32xf32>
    %cst_15 = arith.constant 0.00999999977 : f32
    %19 = vector.broadcast %cst_15 : f32 to vector<16x32xf32>
    %20 = arith.mulf %19, %16 : vector<16x32xf32>
    %21 = arith.select %18, %16, %20 : vector<16x32xi1>, vector<16x32xf32>
    %c0_16 = arith.constant 0 : index
    %c0_17 = arith.constant 0 : index
    %22 = vector.load %arg7[%c0_16, %c0_17] : memref<32x32xf32, #tpu.memory_space<vmem>>, vector<32x32xf32>
    %cst_18 = arith.constant dense<0.000000e+00> : vector<16x32xf32>
    %23 = tpu.matmul %21, %22, %cst_18 {dimension_numbers = #tpu.dot_dimension_numbers<[1], [0], [0], [1], [0, 0, 1, 1], [], []>} : vector<16x32xf32>, vector<32x32xf32>, vector<16x32xf32> -> vector<16x32xf32>
    %c0_19 = arith.constant 0 : index
    %c0_20 = arith.constant 0 : index
    %24 = vector.load %arg8[%c0_19, %c0_20] : memref<1x32xf32, #tpu.memory_space<vmem>>, vector<1x32xf32>
    %25 = vector.broadcast %24 : vector<1x32xf32> to vector<16x32xf32>
    %26 = arith.addf %23, %25 : vector<16x32xf32>
    %27 = vector.extract_strided_slice %26 {offsets = [0, 0], sizes = [16, 16], strides = [1, 1]} : vector<16x32xf32> to vector<16x16xf32>
    %28 = vector.extract_strided_slice %26 {offsets = [0, 16], sizes = [16, 16], strides = [1, 1]} : vector<16x32xf32> to vector<16x16xf32>
    %cst_21 = arith.constant 5.000000e-01 : f32
    %29 = vector.broadcast %cst_21 : f32 to vector<16x16xf32>
    %30 = arith.mulf %29, %28 : vector<16x16xf32>
    %31 = math.exp %30 : vector<16x16xf32>
    %32 = arith.mulf %31, %1 : vector<16x16xf32>
    %33 = arith.addf %27, %32 : vector<16x16xf32>
    %cst_22 = arith.constant dense<0.000000e+00> : vector<16xf32>
    %34 = vector.multi_reduction <add>, %28, %cst_22 [1] : vector<16x16xf32> to vector<16xf32>
    %35 = vector.shape_cast %34 : vector<16xf32> to vector<16x1xf32>
    %cst_23 = arith.constant 5.000000e-01 : f32
    %36 = vector.broadcast %cst_23 : f32 to vector<16x1xf32>
    %37 = arith.mulf %36, %35 : vector<16x1xf32>
    %cst_24 = arith.constant -14.7030163 : f32
    %38 = vector.broadcast %cst_24 : f32 to vector<16x1xf32>
    %39 = arith.subf %38, %37 : vector<16x1xf32>
    %40 = arith.mulf %1, %1 : vector<16x16xf32>
    %cst_25 = arith.constant dense<0.000000e+00> : vector<16xf32>
    %41 = vector.multi_reduction <add>, %40, %cst_25 [1] : vector<16x16xf32> to vector<16xf32>
    %42 = vector.shape_cast %41 : vector<16xf32> to vector<16x1xf32>
    %cst_26 = arith.constant 5.000000e-01 : f32
    %43 = vector.broadcast %cst_26 : f32 to vector<16x1xf32>
    %44 = arith.mulf %43, %42 : vector<16x1xf32>
    %45 = arith.subf %39, %44 : vector<16x1xf32>
    %46 = arith.mulf %33, %33 : vector<16x16xf32>
    %cst_27 = arith.constant dense<0.000000e+00> : vector<16xf32>
    %47 = vector.multi_reduction <add>, %46, %cst_27 [1] : vector<16x16xf32> to vector<16xf32>
    %48 = vector.shape_cast %47 : vector<16xf32> to vector<16x1xf32>
    %cst_28 = arith.constant 5.000000e-01 : f32
    %49 = vector.broadcast %cst_28 : f32 to vector<16x1xf32>
    %50 = arith.mulf %49, %48 : vector<16x1xf32>
    %cst_29 = arith.constant -14.7030163 : f32
    %51 = vector.broadcast %cst_29 : f32 to vector<16x1xf32>
    %52 = arith.subf %51, %50 : vector<16x1xf32>
    %c0_30 = arith.constant 0 : index
    %c0_31 = arith.constant 0 : index
    %53 = vector.load %arg9[%c0_30, %c0_31] : memref<16x32xf32, #tpu.memory_space<vmem>>, vector<16x32xf32>
    %cst_32 = arith.constant dense<0.000000e+00> : vector<16x32xf32>
    %54 = tpu.matmul %33, %53, %cst_32 {dimension_numbers = #tpu.dot_dimension_numbers<[1], [0], [0], [1], [0, 0, 1, 1], [], []>} : vector<16x16xf32>, vector<16x32xf32>, vector<16x32xf32> -> vector<16x32xf32>
    %c0_33 = arith.constant 0 : index
    %c0_34 = arith.constant 0 : index
    %55 = vector.load %arg10[%c0_33, %c0_34] : memref<1x32xf32, #tpu.memory_space<vmem>>, vector<1x32xf32>
    %56 = vector.broadcast %55 : vector<1x32xf32> to vector<16x32xf32>
    %57 = arith.addf %54, %56 : vector<16x32xf32>
    %cst_35 = arith.constant 0.000000e+00 : f32
    %58 = vector.broadcast %cst_35 : f32 to vector<16x32xf32>
    %59 = arith.cmpf ogt, %57, %58 : vector<16x32xf32>
    %cst_36 = arith.constant 0.00999999977 : f32
    %60 = vector.broadcast %cst_36 : f32 to vector<16x32xf32>
    %61 = arith.mulf %60, %57 : vector<16x32xf32>
    %62 = arith.select %59, %57, %61 : vector<16x32xi1>, vector<16x32xf32>
    %c0_37 = arith.constant 0 : index
    %c0_38 = arith.constant 0 : index
    %63 = vector.load %arg11[%c0_37, %c0_38] : memref<32x32xf32, #tpu.memory_space<vmem>>, vector<32x32xf32>
    %cst_39 = arith.constant dense<0.000000e+00> : vector<16x32xf32>
    %64 = tpu.matmul %62, %63, %cst_39 {dimension_numbers = #tpu.dot_dimension_numbers<[1], [0], [0], [1], [0, 0, 1, 1], [], []>} : vector<16x32xf32>, vector<32x32xf32>, vector<16x32xf32> -> vector<16x32xf32>
    %c0_40 = arith.constant 0 : index
    %c0_41 = arith.constant 0 : index
    %65 = vector.load %arg12[%c0_40, %c0_41] : memref<1x32xf32, #tpu.memory_space<vmem>>, vector<1x32xf32>
    %66 = vector.broadcast %65 : vector<1x32xf32> to vector<16x32xf32>
    %67 = arith.addf %64, %66 : vector<16x32xf32>
    %cst_42 = arith.constant 0.000000e+00 : f32
    %68 = vector.broadcast %cst_42 : f32 to vector<16x32xf32>
    %69 = arith.cmpf ogt, %67, %68 : vector<16x32xf32>
    %cst_43 = arith.constant 0.00999999977 : f32
    %70 = vector.broadcast %cst_43 : f32 to vector<16x32xf32>
    %71 = arith.mulf %70, %67 : vector<16x32xf32>
    %72 = arith.select %69, %67, %71 : vector<16x32xi1>, vector<16x32xf32>
    %c0_44 = arith.constant 0 : index
    %c0_45 = arith.constant 0 : index
    %73 = vector.load %arg13[%c0_44, %c0_45] : memref<32x2176xf32, #tpu.memory_space<vmem>>, vector<32x2176xf32>
    %cst_46 = arith.constant dense<0.000000e+00> : vector<16x2176xf32>
    %74 = tpu.matmul %72, %73, %cst_46 {dimension_numbers = #tpu.dot_dimension_numbers<[1], [0], [0], [1], [0, 0, 1, 1], [], []>} : vector<16x32xf32>, vector<32x2176xf32>, vector<16x2176xf32> -> vector<16x2176xf32>
    %c0_47 = arith.constant 0 : index
    %c0_48 = arith.constant 0 : index
    %75 = vector.load %arg14[%c0_47, %c0_48] : memref<1x2176xf32, #tpu.memory_space<vmem>>, vector<1x2176xf32>
    %76 = vector.broadcast %75 : vector<1x2176xf32> to vector<16x2176xf32>
    %77 = arith.addf %74, %76 : vector<16x2176xf32>
    %78 = vector.extract_strided_slice %77 {offsets = [0, 0], sizes = [16, 128], strides = [1, 1]} : vector<16x2176xf32> to vector<16x128xf32>
    %79 = vector.extract_strided_slice %77 {offsets = [0, 128], sizes = [16, 128], strides = [1, 1]} : vector<16x2176xf32> to vector<16x128xf32>
    %80 = arith.maximumf %78, %79 : vector<16x128xf32>
    %81 = vector.extract_strided_slice %77 {offsets = [0, 256], sizes = [16, 128], strides = [1, 1]} : vector<16x2176xf32> to vector<16x128xf32>
    %82 = arith.maximumf %80, %81 : vector<16x128xf32>
    %83 = vector.extract_strided_slice %77 {offsets = [0, 384], sizes = [16, 128], strides = [1, 1]} : vector<16x2176xf32> to vector<16x128xf32>
    %84 = arith.maximumf %82, %83 : vector<16x128xf32>
    %85 = vector.extract_strided_slice %77 {offsets = [0, 512], sizes = [16, 128], strides = [1, 1]} : vector<16x2176xf32> to vector<16x128xf32>
    %86 = arith.maximumf %84, %85 : vector<16x128xf32>
    %87 = vector.extract_strided_slice %77 {offsets = [0, 640], sizes = [16, 128], strides = [1, 1]} : vector<16x2176xf32> to vector<16x128xf32>
    %88 = arith.maximumf %86, %87 : vector<16x128xf32>
    %89 = vector.extract_strided_slice %77 {offsets = [0, 768], sizes = [16, 128], strides = [1, 1]} : vector<16x2176xf32> to vector<16x128xf32>
    %90 = arith.maximumf %88, %89 : vector<16x128xf32>
    %91 = vector.extract_strided_slice %77 {offsets = [0, 896], sizes = [16, 128], strides = [1, 1]} : vector<16x2176xf32> to vector<16x128xf32>
    %92 = arith.maximumf %90, %91 : vector<16x128xf32>
    %93 = vector.extract_strided_slice %77 {offsets = [0, 1024], sizes = [16, 128], strides = [1, 1]} : vector<16x2176xf32> to vector<16x128xf32>
    %94 = arith.maximumf %92, %93 : vector<16x128xf32>
    %95 = vector.extract_strided_slice %77 {offsets = [0, 1152], sizes = [16, 128], strides = [1, 1]} : vector<16x2176xf32> to vector<16x128xf32>
    %96 = arith.maximumf %94, %95 : vector<16x128xf32>
    %97 = vector.extract_strided_slice %77 {offsets = [0, 1280], sizes = [16, 128], strides = [1, 1]} : vector<16x2176xf32> to vector<16x128xf32>
    %98 = arith.maximumf %96, %97 : vector<16x128xf32>
    %99 = vector.extract_strided_slice %77 {offsets = [0, 1408], sizes = [16, 128], strides = [1, 1]} : vector<16x2176xf32> to vector<16x128xf32>
    %100 = arith.maximumf %98, %99 : vector<16x128xf32>
    %101 = vector.extract_strided_slice %77 {offsets = [0, 1536], sizes = [16, 128], strides = [1, 1]} : vector<16x2176xf32> to vector<16x128xf32>
    %102 = arith.maximumf %100, %101 : vector<16x128xf32>
    %103 = vector.extract_strided_slice %77 {offsets = [0, 1664], sizes = [16, 128], strides = [1, 1]} : vector<16x2176xf32> to vector<16x128xf32>
    %104 = arith.maximumf %102, %103 : vector<16x128xf32>
    %105 = vector.extract_strided_slice %77 {offsets = [0, 1792], sizes = [16, 128], strides = [1, 1]} : vector<16x2176xf32> to vector<16x128xf32>
    %106 = arith.maximumf %104, %105 : vector<16x128xf32>
    %107 = vector.extract_strided_slice %77 {offsets = [0, 1920], sizes = [16, 128], strides = [1, 1]} : vector<16x2176xf32> to vector<16x128xf32>
    %108 = arith.maximumf %106, %107 : vector<16x128xf32>
    %109 = vector.extract_strided_slice %77 {offsets = [0, 2048], sizes = [16, 128], strides = [1, 1]} : vector<16x2176xf32> to vector<16x128xf32>
    %110 = arith.maximumf %108, %109 : vector<16x128xf32>
    %cst_49 = arith.constant 0.000000e+00 : f32
    %111 = vector.broadcast %cst_49 : f32 to vector<16x128xf32>
    %cst_50 = arith.constant 0.000000e+00 : f32
    %112 = vector.broadcast %cst_50 : f32 to vector<16x128xf32>
    %113 = vector.extract_strided_slice %77 {offsets = [0, 0], sizes = [16, 128], strides = [1, 1]} : vector<16x2176xf32> to vector<16x128xf32>
    %114 = arith.subf %113, %110 : vector<16x128xf32>
    %115 = math.exp %114 : vector<16x128xf32>
    %116 = arith.addf %111, %115 : vector<16x128xf32>
    %cst_51 = arith.constant 0.000000e+00 : f32
    %117 = vector.broadcast %cst_51 : f32 to vector<16x128xf32>
    %118 = arith.cmpf oeq, %0, %117 : vector<16x128xf32>
    %cst_52 = arith.constant 0.000000e+00 : f32
    %119 = vector.broadcast %cst_52 : f32 to vector<16x128xf32>
    %120 = arith.select %118, %113, %119 : vector<16x128xi1>, vector<16x128xf32>
    %121 = arith.addf %112, %120 : vector<16x128xf32>
    %122 = vector.extract_strided_slice %77 {offsets = [0, 128], sizes = [16, 128], strides = [1, 1]} : vector<16x2176xf32> to vector<16x128xf32>
    %123 = arith.subf %122, %110 : vector<16x128xf32>
    %124 = math.exp %123 : vector<16x128xf32>
    %125 = arith.addf %116, %124 : vector<16x128xf32>
    %cst_53 = arith.constant 1.000000e+00 : f32
    %126 = vector.broadcast %cst_53 : f32 to vector<16x128xf32>
    %127 = arith.cmpf oeq, %0, %126 : vector<16x128xf32>
    %cst_54 = arith.constant 0.000000e+00 : f32
    %128 = vector.broadcast %cst_54 : f32 to vector<16x128xf32>
    %129 = arith.select %127, %122, %128 : vector<16x128xi1>, vector<16x128xf32>
    %130 = arith.addf %121, %129 : vector<16x128xf32>
    %131 = vector.extract_strided_slice %77 {offsets = [0, 256], sizes = [16, 128], strides = [1, 1]} : vector<16x2176xf32> to vector<16x128xf32>
    %132 = arith.subf %131, %110 : vector<16x128xf32>
    %133 = math.exp %132 : vector<16x128xf32>
    %134 = arith.addf %125, %133 : vector<16x128xf32>
    %cst_55 = arith.constant 2.000000e+00 : f32
    %135 = vector.broadcast %cst_55 : f32 to vector<16x128xf32>
    %136 = arith.cmpf oeq, %0, %135 : vector<16x128xf32>
    %cst_56 = arith.constant 0.000000e+00 : f32
    %137 = vector.broadcast %cst_56 : f32 to vector<16x128xf32>
    %138 = arith.select %136, %131, %137 : vector<16x128xi1>, vector<16x128xf32>
    %139 = arith.addf %130, %138 : vector<16x128xf32>
    %140 = vector.extract_strided_slice %77 {offsets = [0, 384], sizes = [16, 128], strides = [1, 1]} : vector<16x2176xf32> to vector<16x128xf32>
    %141 = arith.subf %140, %110 : vector<16x128xf32>
    %142 = math.exp %141 : vector<16x128xf32>
    %143 = arith.addf %134, %142 : vector<16x128xf32>
    %cst_57 = arith.constant 3.000000e+00 : f32
    %144 = vector.broadcast %cst_57 : f32 to vector<16x128xf32>
    %145 = arith.cmpf oeq, %0, %144 : vector<16x128xf32>
    %cst_58 = arith.constant 0.000000e+00 : f32
    %146 = vector.broadcast %cst_58 : f32 to vector<16x128xf32>
    %147 = arith.select %145, %140, %146 : vector<16x128xi1>, vector<16x128xf32>
    %148 = arith.addf %139, %147 : vector<16x128xf32>
    %149 = vector.extract_strided_slice %77 {offsets = [0, 512], sizes = [16, 128], strides = [1, 1]} : vector<16x2176xf32> to vector<16x128xf32>
    %150 = arith.subf %149, %110 : vector<16x128xf32>
    %151 = math.exp %150 : vector<16x128xf32>
    %152 = arith.addf %143, %151 : vector<16x128xf32>
    %cst_59 = arith.constant 4.000000e+00 : f32
    %153 = vector.broadcast %cst_59 : f32 to vector<16x128xf32>
    %154 = arith.cmpf oeq, %0, %153 : vector<16x128xf32>
    %cst_60 = arith.constant 0.000000e+00 : f32
    %155 = vector.broadcast %cst_60 : f32 to vector<16x128xf32>
    %156 = arith.select %154, %149, %155 : vector<16x128xi1>, vector<16x128xf32>
    %157 = arith.addf %148, %156 : vector<16x128xf32>
    %158 = vector.extract_strided_slice %77 {offsets = [0, 640], sizes = [16, 128], strides = [1, 1]} : vector<16x2176xf32> to vector<16x128xf32>
    %159 = arith.subf %158, %110 : vector<16x128xf32>
    %160 = math.exp %159 : vector<16x128xf32>
    %161 = arith.addf %152, %160 : vector<16x128xf32>
    %cst_61 = arith.constant 5.000000e+00 : f32
    %162 = vector.broadcast %cst_61 : f32 to vector<16x128xf32>
    %163 = arith.cmpf oeq, %0, %162 : vector<16x128xf32>
    %cst_62 = arith.constant 0.000000e+00 : f32
    %164 = vector.broadcast %cst_62 : f32 to vector<16x128xf32>
    %165 = arith.select %163, %158, %164 : vector<16x128xi1>, vector<16x128xf32>
    %166 = arith.addf %157, %165 : vector<16x128xf32>
    %167 = vector.extract_strided_slice %77 {offsets = [0, 768], sizes = [16, 128], strides = [1, 1]} : vector<16x2176xf32> to vector<16x128xf32>
    %168 = arith.subf %167, %110 : vector<16x128xf32>
    %169 = math.exp %168 : vector<16x128xf32>
    %170 = arith.addf %161, %169 : vector<16x128xf32>
    %cst_63 = arith.constant 6.000000e+00 : f32
    %171 = vector.broadcast %cst_63 : f32 to vector<16x128xf32>
    %172 = arith.cmpf oeq, %0, %171 : vector<16x128xf32>
    %cst_64 = arith.constant 0.000000e+00 : f32
    %173 = vector.broadcast %cst_64 : f32 to vector<16x128xf32>
    %174 = arith.select %172, %167, %173 : vector<16x128xi1>, vector<16x128xf32>
    %175 = arith.addf %166, %174 : vector<16x128xf32>
    %176 = vector.extract_strided_slice %77 {offsets = [0, 896], sizes = [16, 128], strides = [1, 1]} : vector<16x2176xf32> to vector<16x128xf32>
    %177 = arith.subf %176, %110 : vector<16x128xf32>
    %178 = math.exp %177 : vector<16x128xf32>
    %179 = arith.addf %170, %178 : vector<16x128xf32>
    %cst_65 = arith.constant 7.000000e+00 : f32
    %180 = vector.broadcast %cst_65 : f32 to vector<16x128xf32>
    %181 = arith.cmpf oeq, %0, %180 : vector<16x128xf32>
    %cst_66 = arith.constant 0.000000e+00 : f32
    %182 = vector.broadcast %cst_66 : f32 to vector<16x128xf32>
    %183 = arith.select %181, %176, %182 : vector<16x128xi1>, vector<16x128xf32>
    %184 = arith.addf %175, %183 : vector<16x128xf32>
    %185 = vector.extract_strided_slice %77 {offsets = [0, 1024], sizes = [16, 128], strides = [1, 1]} : vector<16x2176xf32> to vector<16x128xf32>
    %186 = arith.subf %185, %110 : vector<16x128xf32>
    %187 = math.exp %186 : vector<16x128xf32>
    %188 = arith.addf %179, %187 : vector<16x128xf32>
    %cst_67 = arith.constant 8.000000e+00 : f32
    %189 = vector.broadcast %cst_67 : f32 to vector<16x128xf32>
    %190 = arith.cmpf oeq, %0, %189 : vector<16x128xf32>
    %cst_68 = arith.constant 0.000000e+00 : f32
    %191 = vector.broadcast %cst_68 : f32 to vector<16x128xf32>
    %192 = arith.select %190, %185, %191 : vector<16x128xi1>, vector<16x128xf32>
    %193 = arith.addf %184, %192 : vector<16x128xf32>
    %194 = vector.extract_strided_slice %77 {offsets = [0, 1152], sizes = [16, 128], strides = [1, 1]} : vector<16x2176xf32> to vector<16x128xf32>
    %195 = arith.subf %194, %110 : vector<16x128xf32>
    %196 = math.exp %195 : vector<16x128xf32>
    %197 = arith.addf %188, %196 : vector<16x128xf32>
    %cst_69 = arith.constant 9.000000e+00 : f32
    %198 = vector.broadcast %cst_69 : f32 to vector<16x128xf32>
    %199 = arith.cmpf oeq, %0, %198 : vector<16x128xf32>
    %cst_70 = arith.constant 0.000000e+00 : f32
    %200 = vector.broadcast %cst_70 : f32 to vector<16x128xf32>
    %201 = arith.select %199, %194, %200 : vector<16x128xi1>, vector<16x128xf32>
    %202 = arith.addf %193, %201 : vector<16x128xf32>
    %203 = vector.extract_strided_slice %77 {offsets = [0, 1280], sizes = [16, 128], strides = [1, 1]} : vector<16x2176xf32> to vector<16x128xf32>
    %204 = arith.subf %203, %110 : vector<16x128xf32>
    %205 = math.exp %204 : vector<16x128xf32>
    %206 = arith.addf %197, %205 : vector<16x128xf32>
    %cst_71 = arith.constant 1.000000e+01 : f32
    %207 = vector.broadcast %cst_71 : f32 to vector<16x128xf32>
    %208 = arith.cmpf oeq, %0, %207 : vector<16x128xf32>
    %cst_72 = arith.constant 0.000000e+00 : f32
    %209 = vector.broadcast %cst_72 : f32 to vector<16x128xf32>
    %210 = arith.select %208, %203, %209 : vector<16x128xi1>, vector<16x128xf32>
    %211 = arith.addf %202, %210 : vector<16x128xf32>
    %212 = vector.extract_strided_slice %77 {offsets = [0, 1408], sizes = [16, 128], strides = [1, 1]} : vector<16x2176xf32> to vector<16x128xf32>
    %213 = arith.subf %212, %110 : vector<16x128xf32>
    %214 = math.exp %213 : vector<16x128xf32>
    %215 = arith.addf %206, %214 : vector<16x128xf32>
    %cst_73 = arith.constant 1.100000e+01 : f32
    %216 = vector.broadcast %cst_73 : f32 to vector<16x128xf32>
    %217 = arith.cmpf oeq, %0, %216 : vector<16x128xf32>
    %cst_74 = arith.constant 0.000000e+00 : f32
    %218 = vector.broadcast %cst_74 : f32 to vector<16x128xf32>
    %219 = arith.select %217, %212, %218 : vector<16x128xi1>, vector<16x128xf32>
    %220 = arith.addf %211, %219 : vector<16x128xf32>
    %221 = vector.extract_strided_slice %77 {offsets = [0, 1536], sizes = [16, 128], strides = [1, 1]} : vector<16x2176xf32> to vector<16x128xf32>
    %222 = arith.subf %221, %110 : vector<16x128xf32>
    %223 = math.exp %222 : vector<16x128xf32>
    %224 = arith.addf %215, %223 : vector<16x128xf32>
    %cst_75 = arith.constant 1.200000e+01 : f32
    %225 = vector.broadcast %cst_75 : f32 to vector<16x128xf32>
    %226 = arith.cmpf oeq, %0, %225 : vector<16x128xf32>
    %cst_76 = arith.constant 0.000000e+00 : f32
    %227 = vector.broadcast %cst_76 : f32 to vector<16x128xf32>
    %228 = arith.select %226, %221, %227 : vector<16x128xi1>, vector<16x128xf32>
    %229 = arith.addf %220, %228 : vector<16x128xf32>
    %230 = vector.extract_strided_slice %77 {offsets = [0, 1664], sizes = [16, 128], strides = [1, 1]} : vector<16x2176xf32> to vector<16x128xf32>
    %231 = arith.subf %230, %110 : vector<16x128xf32>
    %232 = math.exp %231 : vector<16x128xf32>
    %233 = arith.addf %224, %232 : vector<16x128xf32>
    %cst_77 = arith.constant 1.300000e+01 : f32
    %234 = vector.broadcast %cst_77 : f32 to vector<16x128xf32>
    %235 = arith.cmpf oeq, %0, %234 : vector<16x128xf32>
    %cst_78 = arith.constant 0.000000e+00 : f32
    %236 = vector.broadcast %cst_78 : f32 to vector<16x128xf32>
    %237 = arith.select %235, %230, %236 : vector<16x128xi1>, vector<16x128xf32>
    %238 = arith.addf %229, %237 : vector<16x128xf32>
    %239 = vector.extract_strided_slice %77 {offsets = [0, 1792], sizes = [16, 128], strides = [1, 1]} : vector<16x2176xf32> to vector<16x128xf32>
    %240 = arith.subf %239, %110 : vector<16x128xf32>
    %241 = math.exp %240 : vector<16x128xf32>
    %242 = arith.addf %233, %241 : vector<16x128xf32>
    %cst_79 = arith.constant 1.400000e+01 : f32
    %243 = vector.broadcast %cst_79 : f32 to vector<16x128xf32>
    %244 = arith.cmpf oeq, %0, %243 : vector<16x128xf32>
    %cst_80 = arith.constant 0.000000e+00 : f32
    %245 = vector.broadcast %cst_80 : f32 to vector<16x128xf32>
    %246 = arith.select %244, %239, %245 : vector<16x128xi1>, vector<16x128xf32>
    %247 = arith.addf %238, %246 : vector<16x128xf32>
    %248 = vector.extract_strided_slice %77 {offsets = [0, 1920], sizes = [16, 128], strides = [1, 1]} : vector<16x2176xf32> to vector<16x128xf32>
    %249 = arith.subf %248, %110 : vector<16x128xf32>
    %250 = math.exp %249 : vector<16x128xf32>
    %251 = arith.addf %242, %250 : vector<16x128xf32>
    %cst_81 = arith.constant 1.500000e+01 : f32
    %252 = vector.broadcast %cst_81 : f32 to vector<16x128xf32>
    %253 = arith.cmpf oeq, %0, %252 : vector<16x128xf32>
    %cst_82 = arith.constant 0.000000e+00 : f32
    %254 = vector.broadcast %cst_82 : f32 to vector<16x128xf32>
    %255 = arith.select %253, %248, %254 : vector<16x128xi1>, vector<16x128xf32>
    %256 = arith.addf %247, %255 : vector<16x128xf32>
    %257 = vector.extract_strided_slice %77 {offsets = [0, 2048], sizes = [16, 128], strides = [1, 1]} : vector<16x2176xf32> to vector<16x128xf32>
    %258 = arith.subf %257, %110 : vector<16x128xf32>
    %259 = math.exp %258 : vector<16x128xf32>
    %260 = arith.addf %251, %259 : vector<16x128xf32>
    %cst_83 = arith.constant 1.600000e+01 : f32
    %261 = vector.broadcast %cst_83 : f32 to vector<16x128xf32>
    %262 = arith.cmpf oeq, %0, %261 : vector<16x128xf32>
    %cst_84 = arith.constant 0.000000e+00 : f32
    %263 = vector.broadcast %cst_84 : f32 to vector<16x128xf32>
    %264 = arith.select %262, %257, %263 : vector<16x128xi1>, vector<16x128xf32>
    %265 = arith.addf %256, %264 : vector<16x128xf32>
    %266 = arith.subf %265, %110 : vector<16x128xf32>
    %267 = math.log %260 : vector<16x128xf32>
    %268 = arith.subf %266, %267 : vector<16x128xf32>
    %cst_85 = arith.constant -27.6310215 : f32
    %269 = vector.broadcast %cst_85 : f32 to vector<16x128xf32>
    %270 = arith.maximumf %268, %269 : vector<16x128xf32>
    %cst_86 = arith.constant 0.000000e+00 : f32
    %271 = vector.broadcast %cst_86 : f32 to vector<16x128xf32>
    %272 = arith.cmpf oge, %0, %271 : vector<16x128xf32>
    %273 = arith.extui %272 : vector<16x128xi1> to vector<16x128xi32>
    %274 = arith.sitofp %273 : vector<16x128xi32> to vector<16x128xf32>
    %275 = arith.mulf %274, %270 : vector<16x128xf32>
    %cst_87 = arith.constant dense<0.000000e+00> : vector<16xf32>
    %276 = vector.multi_reduction <add>, %275, %cst_87 [1] : vector<16x128xf32> to vector<16xf32>
    %277 = vector.shape_cast %276 : vector<16xf32> to vector<16x1xf32>
    %278 = tpu.iota {dimensions = array<i32: 1>} : vector<16x128xi32>
    %c0_i32 = arith.constant 0 : i32
    %279 = vector.broadcast %c0_i32 : i32 to vector<16x128xi32>
    %280 = arith.cmpi eq, %278, %279 : vector<16x128xi32>
    %c1_i32 = arith.constant 1 : i32
    %281 = vector.broadcast %c1_i32 : i32 to vector<16x128xi32>
    %282 = arith.cmpi eq, %278, %281 : vector<16x128xi32>
    %c2_i32 = arith.constant 2 : i32
    %283 = vector.broadcast %c2_i32 : i32 to vector<16x128xi32>
    %284 = arith.cmpi eq, %278, %283 : vector<16x128xi32>
    %cst_88 = arith.constant 0.000000e+00 : f32
    %285 = vector.shape_cast %52 : vector<16x1xf32> to vector<16x1xf32>
    %286 = vector.broadcast %285 : vector<16x1xf32> to vector<16x128xf32>
    %287 = vector.broadcast %cst_88 : f32 to vector<16x128xf32>
    %288 = arith.select %284, %286, %287 : vector<16x128xi1>, vector<16x128xf32>
    %289 = vector.shape_cast %277 : vector<16x1xf32> to vector<16x1xf32>
    %290 = vector.broadcast %289 : vector<16x1xf32> to vector<16x128xf32>
    %291 = arith.select %282, %290, %288 : vector<16x128xi1>, vector<16x128xf32>
    %292 = vector.shape_cast %45 : vector<16x1xf32> to vector<16x1xf32>
    %293 = vector.broadcast %292 : vector<16x1xf32> to vector<16x128xf32>
    %294 = arith.select %280, %293, %291 : vector<16x128xi1>, vector<16x128xf32>
    %c0_89 = arith.constant 0 : index
    %c0_90 = arith.constant 0 : index
    %295 = vector.load %arg15[%c0_89, %c0_90] : memref<16x128xf32, #tpu.memory_space<vmem>>, vector<16x128xf32>
    tpu.vector_store %arg15[%c0_89, %c0_90], %294 {strides = array<i32>} : memref<16x128xf32, #tpu.memory_space<vmem>>, vector<16x128xf32>,
    return
  }
  func.func @transform_0(%arg0: i32) -> (i32, i32) {
    %c0_i32 = arith.constant 0 : i32
    %c0_i32_0 = arith.constant 0 : i32
    return %arg0, %c0_i32 : i32, i32
  }
  func.func @transform_1(%arg0: i32) -> (i32, i32) {
    %c0_i32 = arith.constant 0 : i32
    %c0_i32_0 = arith.constant 0 : i32
    return %arg0, %c0_i32 : i32, i32
  }
  func.func @transform_2(%arg0: i32) -> (i32, i32) {
    %c0_i32 = arith.constant 0 : i32
    %c0_i32_0 = arith.constant 0 : i32
    %c0_i32_1 = arith.constant 0 : i32
    return %c0_i32, %c0_i32_0 : i32, i32
  }
  func.func @transform_3(%arg0: i32) -> (i32, i32) {
    %c0_i32 = arith.constant 0 : i32
    %c0_i32_0 = arith.constant 0 : i32
    %c0_i32_1 = arith.constant 0 : i32
    return %c0_i32, %c0_i32_0 : i32, i32
  }
  func.func @transform_4(%arg0: i32) -> (i32, i32) {
    %c0_i32 = arith.constant 0 : i32
    %c0_i32_0 = arith.constant 0 : i32
    %c0_i32_1 = arith.constant 0 : i32
    return %c0_i32, %c0_i32_0 : i32, i32
  }
  func.func @transform_5(%arg0: i32) -> (i32, i32) {
    %c0_i32 = arith.constant 0 : i32
    %c0_i32_0 = arith.constant 0 : i32
    %c0_i32_1 = arith.constant 0 : i32
    return %c0_i32, %c0_i32_0 : i32, i32
  }
  func.func @transform_6(%arg0: i32) -> (i32, i32) {
    %c0_i32 = arith.constant 0 : i32
    %c0_i32_0 = arith.constant 0 : i32
    %c0_i32_1 = arith.constant 0 : i32
    return %c0_i32, %c0_i32_0 : i32, i32
  }
  func.func @transform_7(%arg0: i32) -> (i32, i32) {
    %c0_i32 = arith.constant 0 : i32
    %c0_i32_0 = arith.constant 0 : i32
    %c0_i32_1 = arith.constant 0 : i32
    return %c0_i32, %c0_i32_0 : i32, i32
  }
  func.func @transform_8(%arg0: i32) -> (i32, i32) {
    %c0_i32 = arith.constant 0 : i32
    %c0_i32_0 = arith.constant 0 : i32
    %c0_i32_1 = arith.constant 0 : i32
    return %c0_i32, %c0_i32_0 : i32, i32
  }
  func.func @transform_9(%arg0: i32) -> (i32, i32) {
    %c0_i32 = arith.constant 0 : i32
    %c0_i32_0 = arith.constant 0 : i32
    %c0_i32_1 = arith.constant 0 : i32
    return %c0_i32, %c0_i32_0 : i32, i32
  }
  func.func @transform_10(%arg0: i32) -> (i32, i32) {
    %c0_i32 = arith.constant 0 : i32
    %c0_i32_0 = arith.constant 0 : i32
    %c0_i32_1 = arith.constant 0 : i32
    return %c0_i32, %c0_i32_0 : i32, i32
  }
  func.func @transform_11(%arg0: i32) -> (i32, i32) {
    %c0_i32 = arith.constant 0 : i32
    %c0_i32_0 = arith.constant 0 : i32
    %c0_i32_1 = arith.constant 0 : i32
    return %c0_i32, %c0_i32_0 : i32, i32
  }
  func.func @transform_12(%arg0: i32) -> (i32, i32) {
    %c0_i32 = arith.constant 0 : i32
    %c0_i32_0 = arith.constant 0 : i32
    %c0_i32_1 = arith.constant 0 : i32
    return %c0_i32, %c0_i32_0 : i32, i32
  }
  func.func @transform_13(%arg0: i32) -> (i32, i32) {
    %c0_i32 = arith.constant 0 : i32
    %c0_i32_0 = arith.constant 0 : i32
    %c0_i32_1 = arith.constant 0 : i32
    return %c0_i32, %c0_i32_0 : i32, i32
  }
  func.func @transform_14(%arg0: i32) -> (i32, i32) {
    %c0_i32 = arith.constant 0 : i32
    %c0_i32_0 = arith.constant 0 : i32
    return %arg0, %c0_i32 : i32, i32
  }
}

</mosaic_0001>

<llo_original>
// kernel: tpu_custom_call.1
$region0: #{tpu_custom_call.1}
  #allocation0 [shape = 'u32[]', space=smem, size = 0x4, offset = 0x4, fixed_abs, tag = 'smem constant byte address 0x4 - core index']
  #allocation1 [shape = 'u32[72,128]{1,0:T(1,128)}', space=vmem, size = 0x9000, scoped, tag = 'internal scratch']
  %s0 = inlined_call_operand.vmem [shape: f32[16,128], index: 0, kind: input, shape index: {}]
  %s1 = inlined_call_operand.vmem [shape: f32[16,16], index: 1, kind: input, shape index: {}]
  %s2 = inlined_call_operand.vmem [shape: f32[128,32], index: 2, kind: input, shape index: {}]
  %s3 = inlined_call_operand.hbm [shape: f32[1,32], index: 3, kind: input, shape index: {}]
  %s4 = inlined_call_operand.vmem [shape: f32[32,32], index: 4, kind: input, shape index: {}]
  %s5 = inlined_call_operand.vmem [shape: f32[1,32], index: 5, kind: input, shape index: {}]
  %s6 = inlined_call_operand.vmem [shape: f32[32,32], index: 6, kind: input, shape index: {}]
  %s7 = inlined_call_operand.vmem [shape: f32[1,32], index: 7, kind: input, shape index: {}]
  %s8 = inlined_call_operand.vmem [shape: f32[16,32], index: 8, kind: input, shape index: {}]
  %s9 = inlined_call_operand.vmem [shape: f32[1,32], index: 9, kind: input, shape index: {}]
  %s10 = inlined_call_operand.vmem [shape: f32[32,32], index: 10, kind: input, shape index: {}]
  %s11 = inlined_call_operand.vmem [shape: f32[1,32], index: 11, kind: input, shape index: {}]
  %s12 = inlined_call_operand.hbm [shape: f32[32,2176], index: 12, kind: input, shape index: {}]
  %s13 = inlined_call_operand.vmem [shape: f32[1,2176], index: 13, kind: input, shape index: {}]
  %s14 = inlined_call_operand.hbm [shape: f32[16,128], index: 14, kind: output, shape index: {}]
  %s15 = sld [smem:[#allocation0]]
  $region74: #{tpu_custom_call.1} parent=0
    _
  %s17 = ssub.s32 1, %s15
  %s18 = scalar_select 0, %s17, %s15
  $region1: #{tpu_custom_call.1} parent=0
    #allocation2 [shape = 'u8[512]{0}', space=vmem, size = 0x400, scoped, tag = 'input window, operand 3, single buffered']
    #allocation3 [shape = 's32[1]{0}', space=sflag, size = 0x4, scoped, tag = 'scoped memory for tpu_custom_call.1']
    #allocation4 [shape = 's32[1]{0}', space=sflag, size = 0x4, scoped, tag = 'scoped memory for tpu_custom_call.1']
    #allocation5 [shape = 'u8[278528]{0}', space=vmem, size = 0x44000, scoped, tag = 'input window, operand 12, single buffered']
    #allocation6 [shape = 's32[1]{0}', space=sflag, size = 0x4, scoped, tag = 'scoped memory for tpu_custom_call.1']
    #allocation7 [shape = 'u8[8192]{0}', space=vmem, size = 0x2000, scoped, tag = 'output window, operand 0, single buffered']
    %19 = vsyncpa [#allocation3], 0
    %20 = vsyncpa [#allocation6], 0
    %21 = vsyncpa [#allocation4], 0
    // Predicated region
    $region2: #{tpu_custom_call.1} parent=1 // pred_check
      _
    $region3: #{tpu_custom_call.1} parent=1 // pred_check_branch
      %23 = sbr.rel (0) target = $region5
    $region4: #{tpu_custom_call.1} parent=1 // pred_region
      _
    $region5: #{tpu_custom_call.1} parent=1 // pred_fallthru
      _
    // Predicated region
    $region6: #{tpu_custom_call.1} parent=1 // pred_check
      _
    $region7: #{tpu_custom_call.1} parent=1 // pred_check_branch
      %25 = sbr.rel (0) target = $region9
    $region8: #{tpu_custom_call.1} parent=1 // pred_region
      _
    $region9: #{tpu_custom_call.1} parent=1 // pred_fallthru
      _
    // Predicated region
    $region10: #{tpu_custom_call.1} parent=1 // pred_check
      _
    $region11: #{tpu_custom_call.1} parent=1 // pred_check_branch
      %27 = sbr.rel (0) target = $region13
    $region12: #{tpu_custom_call.1} parent=1 // pred_region
      _
    $region13: #{tpu_custom_call.1} parent=1 // pred_fallthru
      _
    // Predicated region
    $region14: #{tpu_custom_call.1} parent=1 // pred_check
      _
    $region15: #{tpu_custom_call.1} parent=1 // pred_check_branch
      %29 = sbr.rel (0) target = $region17
    $region16: #{tpu_custom_call.1} parent=1 // pred_region
      %31 = vsyncadd [#allocation3], 0
      %s33 = sshll.u32 %s3, 4
      %s34 = int_to_ptr.hbm [resolvable:$true] %s33
      %s35 = sshll.u32 [#allocation2], 4
      %s36 = int_to_ptr.vmem [resolvable:$true] %s35
      %38 = dma.hbm_to_vmem [thread:$0]  %s34, 16, %s36, [#allocation3]
    $region17: #{tpu_custom_call.1} parent=1 // pred_fallthru
      _
    // Predicated region
    $region18: #{tpu_custom_call.1} parent=1 // pred_check
      _
    $region19: #{tpu_custom_call.1} parent=1 // pred_check_branch
      %40 = sbr.rel (0) target = $region21
    $region20: #{tpu_custom_call.1} parent=1 // pred_region
      _
    $region21: #{tpu_custom_call.1} parent=1 // pred_fallthru
      _
    // Predicated region
    $region22: #{tpu_custom_call.1} parent=1 // pred_check
      _
    $region23: #{tpu_custom_call.1} parent=1 // pred_check_branch
      %42 = sbr.rel (0) target = $region25
    $region24: #{tpu_custom_call.1} parent=1 // pred_region
      _
    $region25: #{tpu_custom_call.1} parent=1 // pred_fallthru
      _
    // Predicated region
    $region26: #{tpu_custom_call.1} parent=1 // pred_check
      _
    $region27: #{tpu_custom_call.1} parent=1 // pred_check_branch
      %44 = sbr.rel (0) target = $region29
    $region28: #{tpu_custom_call.1} parent=1 // pred_region
      _
    $region29: #{tpu_custom_call.1} parent=1 // pred_fallthru
      _
    // Predicated region
    $region30: #{tpu_custom_call.1} parent=1 // pred_check
      _
    $region31: #{tpu_custom_call.1} parent=1 // pred_check_branch
      %46 = sbr.rel (0) target = $region33
    $region32: #{tpu_custom_call.1} parent=1 // pred_region
      _
    $region33: #{tpu_custom_call.1} parent=1 // pred_fallthru
      _
    // Predicated region
    $region34: #{tpu_custom_call.1} parent=1 // pred_check
      _
    $region35: #{tpu_custom_call.1} parent=1 // pred_check_branch
      %48 = sbr.rel (0) target = $region37
    $region36: #{tpu_custom_call.1} parent=1 // pred_region
      _
    $region37: #{tpu_custom_call.1} parent=1 // pred_fallthru
      _
    // Predicated region
    $region38: #{tpu_custom_call.1} parent=1 // pred_check
      _
    $region39: #{tpu_custom_call.1} parent=1 // pred_check_branch
      %50 = sbr.rel (0) target = $region41
    $region40: #{tpu_custom_call.1} parent=1 // pred_region
      _
    $region41: #{tpu_custom_call.1} parent=1 // pred_fallthru
      _
    // Predicated region
    $region42: #{tpu_custom_call.1} parent=1 // pred_check
      _
    $region43: #{tpu_custom_call.1} parent=1 // pred_check_branch
      %52 = sbr.rel (0) target = $region45
    $region44: #{tpu_custom_call.1} parent=1 // pred_region
      _
    $region45: #{tpu_custom_call.1} parent=1 // pred_fallthru
      _
    // Predicated region
    $region46: #{tpu_custom_call.1} parent=1 // pred_check
      _
    $region47: #{tpu_custom_call.1} parent=1 // pred_check_branch
      %54 = sbr.rel (0) target = $region49
    $region48: #{tpu_custom_call.1} parent=1 // pred_region
      _
    $region49: #{tpu_custom_call.1} parent=1 // pred_fallthru
      _
    // Predicated region
    $region50: #{tpu_custom_call.1} parent=1 // pred_check
      _
    $region51: #{tpu_custom_call.1} parent=1 // pred_check_branch
      %56 = sbr.rel (0) target = $region53
    $region52: #{tpu_custom_call.1} parent=1 // pred_region
      %58 = vsyncadd [#allocation6], 0
      %s59 = sshll.u32 %s12, 4
      %s60 = int_to_ptr.hbm [resolvable:$true] %s59
      %s61 = sshll.u32 [#allocation5], 4
      %s62 = int_to_ptr.vmem [resolvable:$true] %s61
      %67 = dma.hbm_to_vmem [thread:$0]  %s60, 8704, %s62, [#allocation6], 2176, 2176, 136
    $region53: #{tpu_custom_call.1} parent=1 // pred_fallthru
      _
    // Predicated region
    $region54: #{tpu_custom_call.1} parent=1 // pred_check
      _
    $region55: #{tpu_custom_call.1} parent=1 // pred_check_branch
      %69 = sbr.rel (0) target = $region57
    $region56: #{tpu_custom_call.1} parent=1 // pred_region
      _
    $region57: #{tpu_custom_call.1} parent=1 // pred_fallthru
      _
    // Predicated region
    $region58: #{tpu_custom_call.1} parent=1 // pred_check
      _
    $region59: #{tpu_custom_call.1} parent=1 // pred_check_branch
      %71 = sbr.rel (0) target = $region61
    $region60: #{tpu_custom_call.1} parent=1 // pred_region
      %73 = dma.done [#allocation3], 16
    $region61: #{tpu_custom_call.1} parent=1 // pred_fallthru
      _
    // Predicated region
    $region62: #{tpu_custom_call.1} parent=1 // pred_check
      _
    $region63: #{tpu_custom_call.1} parent=1 // pred_check_branch
      %75 = sbr.rel (0) target = $region65
    $region64: #{tpu_custom_call.1} parent=1 // pred_region
      %77 = dma.done [#allocation6], 8704
    $region65: #{tpu_custom_call.1} parent=1 // pred_fallthru
      _
    %v78 = vld [vmem:[%s0] sm:$0xff]
    %v79 = vld [vmem:[%s0 + $0x8] sm:$0xff]
    %v80 = vld [vmem:[%s1] sm:$0xff]
    %v81 = vld [vmem:[%s1 + $0x8] sm:$0xff]
    %v82 = vld [vmem:[%s2] sm:$0xff]
    %v83 = vld [vmem:[%s2 + $0x8] sm:$0xff]
    %v84 = vld [vmem:[%s2 + $0x10] sm:$0xff]
    %v85 = vld [vmem:[%s2 + $0x18] sm:$0xff]
    %v86 = vld [vmem:[%s2 + $0x20] sm:$0xff]
    %v87 = vld [vmem:[%s2 + $0x28] sm:$0xff]
    %v88 = vld [vmem:[%s2 + $0x30] sm:$0xff]
    %v89 = vld [vmem:[%s2 + $0x38] sm:$0xff]
    %v90 = vld [vmem:[%s2 + $0x40] sm:$0xff]
    %v91 = vld [vmem:[%s2 + $0x48] sm:$0xff]
    %v92 = vld [vmem:[%s2 + $0x50] sm:$0xff]
    %v93 = vld [vmem:[%s2 + $0x58] sm:$0xff]
    %v94 = vld [vmem:[%s2 + $0x60] sm:$0xff]
    %v95 = vld [vmem:[%s2 + $0x68] sm:$0xff]
    %v96 = vld [vmem:[%s2 + $0x70] sm:$0xff]
    %v97 = vld [vmem:[%s2 + $0x78] sm:$0xff]
    %v98 = vld [vmem:[#allocation2] sm:$0x1]
    %v100 = vperm.slane %v98, 0
    %102 = vmatpush.msra.mxu0 %v97
    %103 = vmatpush.msra.mxu0 %v96
    %104 = vmatpush.msra.mxu0 %v95
    %105 = vmatpush.msra.mxu0 %v94
    %106 = vmatpush.msra.mxu0 %v93
    %107 = vmatpush.msra.mxu0 %v92
    %108 = vmatpush.msra.mxu0 %v91
    %109 = vmatpush.msra.mxu0 %v90
    %110 = vmatpush.msra.mxu0 %v89
    %111 = vmatpush.msra.mxu0 %v88
    %112 = vmatpush.msra.mxu0 %v87
    %113 = vmatpush.msra.mxu0 %v86
    %114 = vmatpush.msra.mxu0 %v85
    %115 = vmatpush.msra.mxu0 %v84
    %116 = vmatpush.msra.mxu0 %v83
    %117 = vmatpush.msra.mxu0 %v82
    %118 = vmatmul.f32.gmra.mxu0 %v78
    %v119 = vpop.f32.mrf.mxu0
    %v120 = vadd.f32 %v100, %v119
    %121 = vmatmul.f32.gmra.mxu0 %v79
    %v122 = vpop.f32.mrf.mxu0
    %v123 = vadd.f32 %v100, %v122
    %124 = vdwg.mxu0
    %vm125 = vcmp.gt.f32.partialorder %v120, 0.0
    %vm126 = vcmp.gt.f32.partialorder %v123, 0.0
    %v127 = vmul.f32 %v120, 0.01
    %v128 = vmul.f32 %v123, 0.01
    %v129 = vsel %vm125, %v120, %v127
    %v130 = vsel %vm126, %v123, %v128
    %v131 = vld [vmem:[%s4] sm:$0xff]
    %v132 = vld [vmem:[%s4 + $0x8] sm:$0xff]
    %v133 = vld [vmem:[%s4 + $0x10] sm:$0xff]
    %v134 = vld [vmem:[%s4 + $0x18] sm:$0xff]
    %v135 = vld [vmem:[%s5] sm:$0x1]
    %v137 = vperm.slane %v135, 0
    %vm139 = vcmask 261120
    %v141 = vsel %vm139, %v129, 0
    %v144 = vsel %vm139, %v130, 0
    %146 = vmatpush.msra.mxu0 0.0
    %147 = vmatpush.msra.mxu0 0.0
    %148 = vmatpush.msra.mxu0 0.0
    %149 = vmatpush.msra.mxu0 0.0
    %150 = vmatpush.msra.mxu0 0.0
    %151 = vmatpush.msra.mxu0 0.0
    %152 = vmatpush.msra.mxu0 0.0
    %153 = vmatpush.msra.mxu0 0.0
    %154 = vmatpush.msra.mxu0 0.0
    %155 = vmatpush.msra.mxu0 0.0
    %156 = vmatpush.msra.mxu0 0.0
    %157 = vmatpush.msra.mxu0 0.0
    %158 = vmatpush.msra.mxu0 %v134
    %159 = vmatpush.msra.mxu0 %v133
    %160 = vmatpush.msra.mxu0 %v132
    %161 = vmatpush.msra.mxu0 %v131
    %162 = vmatmul.f32.gmra.mxu0 %v141
    %v163 = vpop.f32.mrf.mxu0
    %v164 = vadd.f32 %v137, %v163
    %165 = vmatmul.f32.gmra.mxu0 %v144
    %v166 = vpop.f32.mrf.mxu0
    %v167 = vadd.f32 %v137, %v166
    %168 = vdwg.mxu0
    %vm169 = vcmp.gt.f32.partialorder %v164, 0.0
    %vm170 = vcmp.gt.f32.partialorder %v167, 0.0
    %v171 = vmul.f32 %v164, 0.01
    %v172 = vmul.f32 %v167, 0.01
    %v173 = vsel %vm169, %v164, %v171
    %v174 = vsel %vm170, %v167, %v172
    %v175 = vld [vmem:[%s6] sm:$0xff]
    %v176 = vld [vmem:[%s6 + $0x8] sm:$0xff]
    %v177 = vld [vmem:[%s6 + $0x10] sm:$0xff]
    %v178 = vld [vmem:[%s6 + $0x18] sm:$0xff]
    %v179 = vld [vmem:[%s7] sm:$0x1]
    %v181 = vperm.slane %v179, 0
    %v184 = vsel %vm139, %v173, 0
    %v187 = vsel %vm139, %v174, 0
    %189 = vmatpush.msra.mxu0 0.0
    %190 = vmatpush.msra.mxu0 0.0
    %191 = vmatpush.msra.mxu0 0.0
    %192 = vmatpush.msra.mxu0 0.0
    %193 = vmatpush.msra.mxu0 0.0
    %194 = vmatpush.msra.mxu0 0.0
    %195 = vmatpush.msra.mxu0 0.0
    %196 = vmatpush.msra.mxu0 0.0
    %197 = vmatpush.msra.mxu0 0.0
    %198 = vmatpush.msra.mxu0 0.0
    %199 = vmatpush.msra.mxu0 0.0
    %200 = vmatpush.msra.mxu0 0.0
    %201 = vmatpush.msra.mxu0 %v178
    %202 = vmatpush.msra.mxu0 %v177
    %203 = vmatpush.msra.mxu0 %v176
    %204 = vmatpush.msra.mxu0 %v175
    %205 = vmatmul.f32.gmra.mxu0 %v184
    %v206 = vpop.f32.mrf.mxu0
    %v207 = vadd.f32 %v181, %v206
    %208 = vmatmul.f32.gmra.mxu0 %v187
    %v209 = vpop.f32.mrf.mxu0
    %v210 = vadd.f32 %v181, %v209
    %211 = vdwg.mxu0
    %v212 = vmul.f32 %v207, 0.5
    %v213 = vmul.f32 %v210, 0.5
    %v214 = vmul.f32 %v212, 1.442695
    %v215 = vpow.pop %v214
    %v216 = vmul.f32 %v213, 1.442695
    %v217 = vpow.pop %v216
    %220 = vrot.lane.b32.xlu0 %v80, 16
    %v221 = vpop.permute.xlu0 %220
    %222 = vrot.lane.b32.xlu0 %v81, 16
    %v223 = vpop.permute.xlu0 %222
    %v226 = vmul.f32 %v215, %v221
    %v227 = vmul.f32 %v217, %v223
    %230 = vrot.lane.b32.xlu0 %v226, 112
    %v231 = vpop.permute.xlu0 %230
    %232 = vrot.lane.b32.xlu0 %v227, 112
    %v233 = vpop.permute.xlu0 %232
    %v236 = vadd.f32 %v207, %v231
    %v237 = vadd.f32 %v210, %v233
    %240 = vrot.lane.b32.xlu0 %v207, 112
    %v241 = vpop.permute.xlu0 %240
    %242 = vrot.lane.b32.xlu0 %v210, 112
    %v243 = vpop.permute.xlu0 %242
    %vm246 = vcmask 130048
    %v247 = vsel %vm246, %v241, 0.0
    %248 = vadd.xlane.f32.xlu0 %v247
    %v249 = vpop.xlane.xlu0 %248
    %v250 = vsel %vm246, %v243, 0.0
    %251 = vadd.xlane.f32.xlu0 %v250
    %v252 = vpop.xlane.xlu0 %251
    %v253 = vmul.f32 %v249, 0.5
    %v254 = vmul.f32 %v252, 0.5
    %v255 = vsub.f32 -14.703016, %v253
    %v256 = vsub.f32 -14.703016, %v254
    %v257 = vmul.f32 %v80, %v80
    %v258 = vmul.f32 %v81, %v81
    %v259 = vsel %vm246, %v257, 0.0
    %260 = vadd.xlane.f32.xlu0 %v259
    %v261 = vpop.xlane.xlu0 %260
    %v262 = vsel %vm246, %v258, 0.0
    %263 = vadd.xlane.f32.xlu0 %v262
    %v264 = vpop.xlane.xlu0 %263
    %v265 = vmul.f32 %v261, 0.5
    %v266 = vmul.f32 %v264, 0.5
    %v267 = vsub.f32 %v255, %v265
    %v268 = vsub.f32 %v256, %v266
    %v269 = vmul.f32 %v236, %v236
    %v270 = vmul.f32 %v237, %v237
    %v271 = vsel %vm246, %v269, 0.0
    %272 = vadd.xlane.f32.xlu0 %v271
    %v273 = vpop.xlane.xlu0 %272
    %v274 = vsel %vm246, %v270, 0.0
    %275 = vadd.xlane.f32.xlu0 %v274
    %v276 = vpop.xlane.xlu0 %275
    %v277 = vmul.f32 %v273, 0.5
    %v278 = vmul.f32 %v276, 0.5
    %v279 = vsub.f32 -14.703016, %v277
    %v280 = vsub.f32 -14.703016, %v278
    %v281 = vld [vmem:[%s8] sm:$0xff]
    %v282 = vld [vmem:[%s8 + $0x8] sm:$0xff]
    %v283 = vld [vmem:[%s9] sm:$0x1]
    %v285 = vperm.slane %v283, 0
    %v288 = vsel %vm246, %v236, 0
    %v291 = vsel %vm246, %v237, 0
    %293 = vmatpush.msra.mxu0 0.0
    %294 = vmatpush.msra.mxu0 0.0
    %295 = vmatpush.msra.mxu0 0.0
    %296 = vmatpush.msra.mxu0 0.0
    %297 = vmatpush.msra.mxu0 0.0
    %298 = vmatpush.msra.mxu0 0.0
    %299 = vmatpush.msra.mxu0 0.0
    %300 = vmatpush.msra.mxu0 0.0
    %301 = vmatpush.msra.mxu0 0.0
    %302 = vmatpush.msra.mxu0 0.0
    %303 = vmatpush.msra.mxu0 0.0
    %304 = vmatpush.msra.mxu0 0.0
    %305 = vmatpush.msra.mxu0 0.0
    %306 = vmatpush.msra.mxu0 0.0
    %307 = vmatpush.msra.mxu0 %v282
    %308 = vmatpush.msra.mxu0 %v281
    %309 = vmatmul.f32.gmra.mxu0 %v288
    %v310 = vpop.f32.mrf.mxu0
    %v311 = vadd.f32 %v285, %v310
    %312 = vmatmul.f32.gmra.mxu0 %v291
    %v313 = vpop.f32.mrf.mxu0
    %v314 = vadd.f32 %v285, %v313
    %315 = vdwg.mxu0
    %vm316 = vcmp.gt.f32.partialorder %v311, 0.0
    %vm317 = vcmp.gt.f32.partialorder %v314, 0.0
    %v318 = vmul.f32 %v311, 0.01
    %v319 = vmul.f32 %v314, 0.01
    %v320 = vsel %vm316, %v311, %v318
    %v321 = vsel %vm317, %v314, %v319
    %v322 = vld [vmem:[%s10] sm:$0xff]
    %v323 = vld [vmem:[%s10 + $0x8] sm:$0xff]
    %v324 = vld [vmem:[%s10 + $0x10] sm:$0xff]
    %v325 = vld [vmem:[%s10 + $0x18] sm:$0xff]
    %v326 = vld [vmem:[%s11] sm:$0x1]
    %v328 = vperm.slane %v326, 0
    %v331 = vsel %vm139, %v320, 0
    %v334 = vsel %vm139, %v321, 0
    %336 = vmatpush.msra.mxu0 0.0
    %337 = vmatpush.msra.mxu0 0.0
    %338 = vmatpush.msra.mxu0 0.0
    %339 = vmatpush.msra.mxu0 0.0
    %340 = vmatpush.msra.mxu0 0.0
    %341 = vmatpush.msra.mxu0 0.0
    %342 = vmatpush.msra.mxu0 0.0
    %343 = vmatpush.msra.mxu0 0.0
    %344 = vmatpush.msra.mxu0 0.0
    %345 = vmatpush.msra.mxu0 0.0
    %346 = vmatpush.msra.mxu0 0.0
    %347 = vmatpush.msra.mxu0 0.0
    %348 = vmatpush.msra.mxu0 %v325
    %349 = vmatpush.msra.mxu0 %v324
    %350 = vmatpush.msra.mxu0 %v323
    %351 = vmatpush.msra.mxu0 %v322
    %352 = vmatmul.f32.gmra.mxu0 %v331
    %v353 = vpop.f32.mrf.mxu0
    %v354 = vadd.f32 %v328, %v353
    %355 = vmatmul.f32.gmra.mxu0 %v334
    %v356 = vpop.f32.mrf.mxu0
    %v357 = vadd.f32 %v328, %v356
    %358 = vdwg.mxu0
    %vm359 = vcmp.gt.f32.partialorder %v354, 0.0
    %vm360 = vcmp.gt.f32.partialorder %v357, 0.0
    %v361 = vmul.f32 %v354, 0.01
    %v362 = vmul.f32 %v357, 0.01
    %v363 = vsel %vm359, %v354, %v361
    %v364 = vsel %vm360, %v357, %v362
    %v365 = vld [vmem:[#allocation5] sm:$0xff]
    %v366 = vld [vmem:[#allocation5 + $0x8] sm:$0xff]
    %v367 = vld [vmem:[#allocation5 + $0x10] sm:$0xff]
    %v368 = vld [vmem:[#allocation5 + $0x18] sm:$0xff]
    %v369 = vld [vmem:[#allocation5 + $0x20] sm:$0xff]
    %v370 = vld [vmem:[#allocation5 + $0x28] sm:$0xff]
    %v371 = vld [vmem:[#allocation5 + $0x30] sm:$0xff]
    %v372 = vld [vmem:[#allocation5 + $0x38] sm:$0xff]
    %v373 = vld [vmem:[#allocation5 + $0x40] sm:$0xff]
    %v374 = vld [vmem:[#allocation5 + $0x48] sm:$0xff]
    %v375 = vld [vmem:[#allocation5 + $0x50] sm:$0xff]
    %v376 = vld [vmem:[#allocation5 + $0x58] sm:$0xff]
    %v377 = vld [vmem:[#allocation5 + $0x60] sm:$0xff]
    %v378 = vld [vmem:[#allocation5 + $0x68] sm:$0xff]
    %v379 = vld [vmem:[#allocation5 + $0x70] sm:$0xff]
    %v380 = vld [vmem:[#allocation5 + $0x78] sm:$0xff]
    %v381 = vld [vmem:[#allocation5 + $0x80] sm:$0xff]
    %v382 = vld [vmem:[#allocation5 + $0x88] sm:$0xff]
    %v383 = vld [vmem:[#allocation5 + $0x90] sm:$0xff]
    %v384 = vld [vmem:[#allocation5 + $0x98] sm:$0xff]
    %v385 = vld [vmem:[#allocation5 + $0xa0] sm:$0xff]
    %v386 = vld [vmem:[#allocation5 + $0xa8] sm:$0xff]
    %v387 = vld [vmem:[#allocation5 + $0xb0] sm:$0xff]
    %v388 = vld [vmem:[#allocation5 + $0xb8] sm:$0xff]
    %v389 = vld [vmem:[#allocation5 + $0xc0] sm:$0xff]
    %v390 = vld [vmem:[#allocation5 + $0xc8] sm:$0xff]
    %v391 = vld [vmem:[#allocation5 + $0xd0] sm:$0xff]
    %v392 = vld [vmem:[#allocation5 + $0xd8] sm:$0xff]
    %v393 = vld [vmem:[#allocation5 + $0xe0] sm:$0xff]
    %v394 = vld [vmem:[#allocation5 + $0xe8] sm:$0xff]
    %v395 = vld [vmem:[#allocation5 + $0xf0] sm:$0xff]
    %v396 = vld [vmem:[#allocation5 + $0xf8] sm:$0xff]
    %v397 = vld [vmem:[#allocation5 + $0x100] sm:$0xff]
    %v398 = vld [vmem:[#allocation5 + $0x108] sm:$0xff]
    %v399 = vld [vmem:[#allocation5 + $0x110] sm:$0xff]
    %v400 = vld [vmem:[#allocation5 + $0x118] sm:$0xff]
    %v401 = vld [vmem:[#allocation5 + $0x120] sm:$0xff]
    %v402 = vld [vmem:[#allocation5 + $0x128] sm:$0xff]
    %v403 = vld [vmem:[#allocation5 + $0x130] sm:$0xff]
    %v404 = vld [vmem:[#allocation5 + $0x138] sm:$0xff]
    %v405 = vld [vmem:[#allocation5 + $0x140] sm:$0xff]
    %v406 = vld [vmem:[#allocation5 + $0x148] sm:$0xff]
    %v407 = vld [vmem:[#allocation5 + $0x150] sm:$0xff]
    %v408 = vld [vmem:[#allocation5 + $0x158] sm:$0xff]
    %v409 = vld [vmem:[#allocation5 + $0x160] sm:$0xff]
    %v410 = vld [vmem:[#allocation5 + $0x168] sm:$0xff]
    %v411 = vld [vmem:[#allocation5 + $0x170] sm:$0xff]
    %v412 = vld [vmem:[#allocation5 + $0x178] sm:$0xff]
    %v413 = vld [vmem:[#allocation5 + $0x180] sm:$0xff]
    %v414 = vld [vmem:[#allocation5 + $0x188] sm:$0xff]
    %v415 = vld [vmem:[#allocation5 + $0x190] sm:$0xff]
    %v416 = vld [vmem:[#allocation5 + $0x198] sm:$0xff]
    %v417 = vld [vmem:[#allocation5 + $0x1a0] sm:$0xff]
    %v418 = vld [vmem:[#allocation5 + $0x1a8] sm:$0xff]
    %v419 = vld [vmem:[#allocation5 + $0x1b0] sm:$0xff]
    %v420 = vld [vmem:[#allocation5 + $0x1b8] sm:$0xff]
    %v421 = vld [vmem:[#allocation5 + $0x1c0] sm:$0xff]
    %v422 = vld [vmem:[#allocation5 + $0x1c8] sm:$0xff]
    %v423 = vld [vmem:[#allocation5 + $0x1d0] sm:$0xff]
    %v424 = vld [vmem:[#allocation5 + $0x1d8] sm:$0xff]
    %v425 = vld [vmem:[#allocation5 + $0x1e0] sm:$0xff]
    %v426 = vld [vmem:[#allocation5 + $0x1e8] sm:$0xff]
    %v427 = vld [vmem:[#allocation5 + $0x1f0] sm:$0xff]
    %v428 = vld [vmem:[#allocation5 + $0x1f8] sm:$0xff]
    %v429 = vld [vmem:[#allocation5 + $0x200] sm:$0xff]
    %v430 = vld [vmem:[#allocation5 + $0x208] sm:$0xff]
    %v431 = vld [vmem:[#allocation5 + $0x210] sm:$0xff]
    %v432 = vld [vmem:[#allocation5 + $0x218] sm:$0xff]
    %v433 = vld [vmem:[%s13] sm:$0xff]
    %v434 = vld [vmem:[%s13 + $0x8] sm:$0xff]
    %v435 = vld [vmem:[%s13 + $0x10] sm:$0x1]
    %v439 = vperm.slane %v433, 0
    %v440 = vperm.slane %v433, 1
    %v441 = vperm.slane %v433, 2
    %v442 = vperm.slane %v433, 3
    %v443 = vperm.slane %v433, 4
    %v444 = vperm.slane %v433, 5
    %v445 = vperm.slane %v433, 6
    %v446 = vperm.slane %v433, 7
    %v447 = vperm.slane %v434, 0
    %v448 = vperm.slane %v434, 1
    %v449 = vperm.slane %v434, 2
    %v450 = vperm.slane %v434, 3
    %v451 = vperm.slane %v434, 4
    %v452 = vperm.slane %v434, 5
    %v453 = vperm.slane %v434, 6
    %v454 = vperm.slane %v434, 7
    %v455 = vperm.slane %v435, 0
    %v474 = vsel %vm139, %v363, 0
    %v477 = vsel %vm139, %v364, 0
    %479 = vmatpush.msra.mxu0 0.0
    %480 = vmatpush.msra.mxu0 0.0
    %481 = vmatpush.msra.mxu0 0.0
    %482 = vmatpush.msra.mxu0 0.0
    %483 = vmatpush.msra.mxu0 0.0
    %484 = vmatpush.msra.mxu0 0.0
    %485 = vmatpush.msra.mxu0 0.0
    %486 = vmatpush.msra.mxu0 0.0
    %487 = vmatpush.msra.mxu0 0.0
    %488 = vmatpush.msra.mxu0 0.0
    %489 = vmatpush.msra.mxu0 0.0
    %490 = vmatpush.msra.mxu0 0.0
    %491 = vmatpush.msra.mxu0 %v416
    %492 = vmatpush.msra.mxu0 %v399
    %493 = vmatpush.msra.mxu0 %v382
    %494 = vmatpush.msra.mxu0 %v365
    %495 = vmatmul.f32.gmra.mxu0 %v474
    %v496 = vpop.f32.mrf.mxu0
    %v497 = vadd.f32 %v439, %v496
    %498 = vmatmul.f32.gmra.mxu0 %v477
    %v499 = vpop.f32.mrf.mxu0
    %v500 = vadd.f32 %v439, %v499
    %501 = vdwg.mxu0
    %502 = vmatpush.msra.mxu0 0.0
    %503 = vmatpush.msra.mxu0 0.0
    %504 = vmatpush.msra.mxu0 0.0
    %505 = vmatpush.msra.mxu0 0.0
    %506 = vmatpush.msra.mxu0 0.0
    %507 = vmatpush.msra.mxu0 0.0
    %508 = vmatpush.msra.mxu0 0.0
    %509 = vmatpush.msra.mxu0 0.0
    %510 = vmatpush.msra.mxu0 0.0
    %511 = vmatpush.msra.mxu0 0.0
    %512 = vmatpush.msra.mxu0 0.0
    %513 = vmatpush.msra.mxu0 0.0
    %514 = vmatpush.msra.mxu0 %v417
    %515 = vmatpush.msra.mxu0 %v400
    %516 = vmatpush.msra.mxu0 %v383
    %517 = vmatpush.msra.mxu0 %v366
    %518 = vmatmul.f32.gmra.mxu0 %v474
    %v519 = vpop.f32.mrf.mxu0
    %v520 = vadd.f32 %v440, %v519
    %521 = vmatmul.f32.gmra.mxu0 %v477
    %v522 = vpop.f32.mrf.mxu0
    %v523 = vadd.f32 %v440, %v522
    %524 = vdwg.mxu0
    %525 = vmatpush.msra.mxu0 0.0
    %526 = vmatpush.msra.mxu0 0.0
    %527 = vmatpush.msra.mxu0 0.0
    %528 = vmatpush.msra.mxu0 0.0
    %529 = vmatpush.msra.mxu0 0.0
    %530 = vmatpush.msra.mxu0 0.0
    %531 = vmatpush.msra.mxu0 0.0
    %532 = vmatpush.msra.mxu0 0.0
    %533 = vmatpush.msra.mxu0 0.0
    %534 = vmatpush.msra.mxu0 0.0
    %535 = vmatpush.msra.mxu0 0.0
    %536 = vmatpush.msra.mxu0 0.0
    %537 = vmatpush.msra.mxu0 %v418
    %538 = vmatpush.msra.mxu0 %v401
    %539 = vmatpush.msra.mxu0 %v384
    %540 = vmatpush.msra.mxu0 %v367
    %541 = vmatmul.f32.gmra.mxu0 %v474
    %v542 = vpop.f32.mrf.mxu0
    %v543 = vadd.f32 %v441, %v542
    %544 = vmatmul.f32.gmra.mxu0 %v477
    %v545 = vpop.f32.mrf.mxu0
    %v546 = vadd.f32 %v441, %v545
    %547 = vdwg.mxu0
    %548 = vmatpush.msra.mxu0 0.0
    %549 = vmatpush.msra.mxu0 0.0
    %550 = vmatpush.msra.mxu0 0.0
    %551 = vmatpush.msra.mxu0 0.0
    %552 = vmatpush.msra.mxu0 0.0
    %553 = vmatpush.msra.mxu0 0.0
    %554 = vmatpush.msra.mxu0 0.0
    %555 = vmatpush.msra.mxu0 0.0
    %556 = vmatpush.msra.mxu0 0.0
    %557 = vmatpush.msra.mxu0 0.0
    %558 = vmatpush.msra.mxu0 0.0
    %559 = vmatpush.msra.mxu0 0.0
    %560 = vmatpush.msra.mxu0 %v419
    %561 = vmatpush.msra.mxu0 %v402
    %562 = vmatpush.msra.mxu0 %v385
    %563 = vmatpush.msra.mxu0 %v368
    %564 = vmatmul.f32.gmra.mxu0 %v474
    %v565 = vpop.f32.mrf.mxu0
    %v566 = vadd.f32 %v442, %v565
    %567 = vmatmul.f32.gmra.mxu0 %v477
    %v568 = vpop.f32.mrf.mxu0
    %v569 = vadd.f32 %v442, %v568
    %570 = vdwg.mxu0
    %571 = vmatpush.msra.mxu0 0.0
    %572 = vmatpush.msra.mxu0 0.0
    %573 = vmatpush.msra.mxu0 0.0
    %574 = vmatpush.msra.mxu0 0.0
    %575 = vmatpush.msra.mxu0 0.0
    %576 = vmatpush.msra.mxu0 0.0
    %577 = vmatpush.msra.mxu0 0.0
    %578 = vmatpush.msra.mxu0 0.0
    %579 = vmatpush.msra.mxu0 0.0
    %580 = vmatpush.msra.mxu0 0.0
    %581 = vmatpush.msra.mxu0 0.0
    %582 = vmatpush.msra.mxu0 0.0
    %583 = vmatpush.msra.mxu0 %v420
    %584 = vmatpush.msra.mxu0 %v403
    %585 = vmatpush.msra.mxu0 %v386
    %586 = vmatpush.msra.mxu0 %v369
    %587 = vmatmul.f32.gmra.mxu0 %v474
    %v588 = vpop.f32.mrf.mxu0
    %v589 = vadd.f32 %v443, %v588
    %590 = vmatmul.f32.gmra.mxu0 %v477
    %v591 = vpop.f32.mrf.mxu0
    %v592 = vadd.f32 %v443, %v591
    %593 = vdwg.mxu0
    %594 = vmatpush.msra.mxu0 0.0
    %595 = vmatpush.msra.mxu0 0.0
    %596 = vmatpush.msra.mxu0 0.0
    %597 = vmatpush.msra.mxu0 0.0
    %598 = vmatpush.msra.mxu0 0.0
    %599 = vmatpush.msra.mxu0 0.0
    %600 = vmatpush.msra.mxu0 0.0
    %601 = vmatpush.msra.mxu0 0.0
    %602 = vmatpush.msra.mxu0 0.0
    %603 = vmatpush.msra.mxu0 0.0
    %604 = vmatpush.msra.mxu0 0.0
    %605 = vmatpush.msra.mxu0 0.0
    %606 = vmatpush.msra.mxu0 %v421
    %607 = vmatpush.msra.mxu0 %v404
    %608 = vmatpush.msra.mxu0 %v387
    %609 = vmatpush.msra.mxu0 %v370
    %610 = vmatmul.f32.gmra.mxu0 %v474
    %v611 = vpop.f32.mrf.mxu0
    %v612 = vadd.f32 %v444, %v611
    %613 = vmatmul.f32.gmra.mxu0 %v477
    %v614 = vpop.f32.mrf.mxu0
    %v615 = vadd.f32 %v444, %v614
    %616 = vdwg.mxu0
    %617 = vmatpush.msra.mxu0 0.0
    %618 = vmatpush.msra.mxu0 0.0
    %619 = vmatpush.msra.mxu0 0.0
    %620 = vmatpush.msra.mxu0 0.0
    %621 = vmatpush.msra.mxu0 0.0
    %622 = vmatpush.msra.mxu0 0.0
    %623 = vmatpush.msra.mxu0 0.0
    %624 = vmatpush.msra.mxu0 0.0
    %625 = vmatpush.msra.mxu0 0.0
    %626 = vmatpush.msra.mxu0 0.0
    %627 = vmatpush.msra.mxu0 0.0
    %628 = vmatpush.msra.mxu0 0.0
    %629 = vmatpush.msra.mxu0 %v422
    %630 = vmatpush.msra.mxu0 %v405
    %631 = vmatpush.msra.mxu0 %v388
    %632 = vmatpush.msra.mxu0 %v371
    %633 = vmatmul.f32.gmra.mxu0 %v474
    %v634 = vpop.f32.mrf.mxu0
    %v635 = vadd.f32 %v445, %v634
    %636 = vmatmul.f32.gmra.mxu0 %v477
    %v637 = vpop.f32.mrf.mxu0
    %v638 = vadd.f32 %v445, %v637
    %639 = vdwg.mxu0
    %640 = vmatpush.msra.mxu0 0.0
    %641 = vmatpush.msra.mxu0 0.0
    %642 = vmatpush.msra.mxu0 0.0
    %643 = vmatpush.msra.mxu0 0.0
    %644 = vmatpush.msra.mxu0 0.0
    %645 = vmatpush.msra.mxu0 0.0
    %646 = vmatpush.msra.mxu0 0.0
    %647 = vmatpush.msra.mxu0 0.0
    %648 = vmatpush.msra.mxu0 0.0
    %649 = vmatpush.msra.mxu0 0.0
    %650 = vmatpush.msra.mxu0 0.0
    %651 = vmatpush.msra.mxu0 0.0
    %652 = vmatpush.msra.mxu0 %v423
    %653 = vmatpush.msra.mxu0 %v406
    %654 = vmatpush.msra.mxu0 %v389
    %655 = vmatpush.msra.mxu0 %v372
    %656 = vmatmul.f32.gmra.mxu0 %v474
    %v657 = vpop.f32.mrf.mxu0
    %v658 = vadd.f32 %v446, %v657
    %659 = vmatmul.f32.gmra.mxu0 %v477
    %v660 = vpop.f32.mrf.mxu0
    %v661 = vadd.f32 %v446, %v660
    %662 = vdwg.mxu0
    %663 = vmatpush.msra.mxu0 0.0
    %664 = vmatpush.msra.mxu0 0.0
    %665 = vmatpush.msra.mxu0 0.0
    %666 = vmatpush.msra.mxu0 0.0
    %667 = vmatpush.msra.mxu0 0.0
    %668 = vmatpush.msra.mxu0 0.0
    %669 = vmatpush.msra.mxu0 0.0
    %670 = vmatpush.msra.mxu0 0.0
    %671 = vmatpush.msra.mxu0 0.0
    %672 = vmatpush.msra.mxu0 0.0
    %673 = vmatpush.msra.mxu0 0.0
    %674 = vmatpush.msra.mxu0 0.0
    %675 = vmatpush.msra.mxu0 %v424
    %676 = vmatpush.msra.mxu0 %v407
    %677 = vmatpush.msra.mxu0 %v390
    %678 = vmatpush.msra.mxu0 %v373
    %679 = vmatmul.f32.gmra.mxu0 %v474
    %v680 = vpop.f32.mrf.mxu0
    %v681 = vadd.f32 %v447, %v680
    %682 = vmatmul.f32.gmra.mxu0 %v477
    %v683 = vpop.f32.mrf.mxu0
    %v684 = vadd.f32 %v447, %v683
    %685 = vdwg.mxu0
    %686 = vmatpush.msra.mxu0 0.0
    %687 = vmatpush.msra.mxu0 0.0
    %688 = vmatpush.msra.mxu0 0.0
    %689 = vmatpush.msra.mxu0 0.0
    %690 = vmatpush.msra.mxu0 0.0
    %691 = vmatpush.msra.mxu0 0.0
    %692 = vmatpush.msra.mxu0 0.0
    %693 = vmatpush.msra.mxu0 0.0
    %694 = vmatpush.msra.mxu0 0.0
    %695 = vmatpush.msra.mxu0 0.0
    %696 = vmatpush.msra.mxu0 0.0
    %697 = vmatpush.msra.mxu0 0.0
    %698 = vmatpush.msra.mxu0 %v425
    %699 = vmatpush.msra.mxu0 %v408
    %700 = vmatpush.msra.mxu0 %v391
    %701 = vmatpush.msra.mxu0 %v374
    %702 = vmatmul.f32.gmra.mxu0 %v474
    %v703 = vpop.f32.mrf.mxu0
    %v704 = vadd.f32 %v448, %v703
    %705 = vmatmul.f32.gmra.mxu0 %v477
    %v706 = vpop.f32.mrf.mxu0
    %v707 = vadd.f32 %v448, %v706
    %708 = vdwg.mxu0
    %709 = vmatpush.msra.mxu0 0.0
    %710 = vmatpush.msra.mxu0 0.0
    %711 = vmatpush.msra.mxu0 0.0
    %712 = vmatpush.msra.mxu0 0.0
    %713 = vmatpush.msra.mxu0 0.0
    %714 = vmatpush.msra.mxu0 0.0
    %715 = vmatpush.msra.mxu0 0.0
    %716 = vmatpush.msra.mxu0 0.0
    %717 = vmatpush.msra.mxu0 0.0
    %718 = vmatpush.msra.mxu0 0.0
    %719 = vmatpush.msra.mxu0 0.0
    %720 = vmatpush.msra.mxu0 0.0
    %721 = vmatpush.msra.mxu0 %v426
    %722 = vmatpush.msra.mxu0 %v409
    %723 = vmatpush.msra.mxu0 %v392
    %724 = vmatpush.msra.mxu0 %v375
    %725 = vmatmul.f32.gmra.mxu0 %v474
    %v726 = vpop.f32.mrf.mxu0
    %v727 = vadd.f32 %v449, %v726
    %728 = vmatmul.f32.gmra.mxu0 %v477
    %v729 = vpop.f32.mrf.mxu0
    %v730 = vadd.f32 %v449, %v729
    %731 = vdwg.mxu0
    %732 = vmatpush.msra.mxu0 0.0
    %733 = vmatpush.msra.mxu0 0.0
    %734 = vmatpush.msra.mxu0 0.0
    %735 = vmatpush.msra.mxu0 0.0
    %736 = vmatpush.msra.mxu0 0.0
    %737 = vmatpush.msra.mxu0 0.0
    %738 = vmatpush.msra.mxu0 0.0
    %739 = vmatpush.msra.mxu0 0.0
    %740 = vmatpush.msra.mxu0 0.0
    %741 = vmatpush.msra.mxu0 0.0
    %742 = vmatpush.msra.mxu0 0.0
    %743 = vmatpush.msra.mxu0 0.0
    %744 = vmatpush.msra.mxu0 %v427
    %745 = vmatpush.msra.mxu0 %v410
    %746 = vmatpush.msra.mxu0 %v393
    %747 = vmatpush.msra.mxu0 %v376
    %748 = vmatmul.f32.gmra.mxu0 %v474
    %v749 = vpop.f32.mrf.mxu0
    %v750 = vadd.f32 %v450, %v749
    %751 = vmatmul.f32.gmra.mxu0 %v477
    %v752 = vpop.f32.mrf.mxu0
    %v753 = vadd.f32 %v450, %v752
    %754 = vdwg.mxu0
    %755 = vmatpush.msra.mxu0 0.0
    %756 = vmatpush.msra.mxu0 0.0
    %757 = vmatpush.msra.mxu0 0.0
    %758 = vmatpush.msra.mxu0 0.0
    %759 = vmatpush.msra.mxu0 0.0
    %760 = vmatpush.msra.mxu0 0.0
    %761 = vmatpush.msra.mxu0 0.0
    %762 = vmatpush.msra.mxu0 0.0
    %763 = vmatpush.msra.mxu0 0.0
    %764 = vmatpush.msra.mxu0 0.0
    %765 = vmatpush.msra.mxu0 0.0
    %766 = vmatpush.msra.mxu0 0.0
    %767 = vmatpush.msra.mxu0 %v428
    %768 = vmatpush.msra.mxu0 %v411
    %769 = vmatpush.msra.mxu0 %v394
    %770 = vmatpush.msra.mxu0 %v377
    %771 = vmatmul.f32.gmra.mxu0 %v474
    %v772 = vpop.f32.mrf.mxu0
    %v773 = vadd.f32 %v451, %v772
    %774 = vmatmul.f32.gmra.mxu0 %v477
    %v775 = vpop.f32.mrf.mxu0
    %v776 = vadd.f32 %v451, %v775
    %777 = vdwg.mxu0
    %778 = vmatpush.msra.mxu0 0.0
    %779 = vmatpush.msra.mxu0 0.0
    %780 = vmatpush.msra.mxu0 0.0
    %781 = vmatpush.msra.mxu0 0.0
    %782 = vmatpush.msra.mxu0 0.0
    %783 = vmatpush.msra.mxu0 0.0
    %784 = vmatpush.msra.mxu0 0.0
    %785 = vmatpush.msra.mxu0 0.0
    %786 = vmatpush.msra.mxu0 0.0
    %787 = vmatpush.msra.mxu0 0.0
    %788 = vmatpush.msra.mxu0 0.0
    %789 = vmatpush.msra.mxu0 0.0
    %790 = vmatpush.msra.mxu0 %v429
    %791 = vmatpush.msra.mxu0 %v412
    %792 = vmatpush.msra.mxu0 %v395
    %793 = vmatpush.msra.mxu0 %v378
    %794 = vmatmul.f32.gmra.mxu0 %v474
    %v795 = vpop.f32.mrf.mxu0
    %v796 = vadd.f32 %v452, %v795
    %797 = vmatmul.f32.gmra.mxu0 %v477
    %v798 = vpop.f32.mrf.mxu0
    %v799 = vadd.f32 %v452, %v798
    %800 = vdwg.mxu0
    %801 = vmatpush.msra.mxu0 0.0
    %802 = vmatpush.msra.mxu0 0.0
    %803 = vmatpush.msra.mxu0 0.0
    %804 = vmatpush.msra.mxu0 0.0
    %805 = vmatpush.msra.mxu0 0.0
    %806 = vmatpush.msra.mxu0 0.0
    %807 = vmatpush.msra.mxu0 0.0
    %808 = vmatpush.msra.mxu0 0.0
    %809 = vmatpush.msra.mxu0 0.0
    %810 = vmatpush.msra.mxu0 0.0
    %811 = vmatpush.msra.mxu0 0.0
    %812 = vmatpush.msra.mxu0 0.0
    %813 = vmatpush.msra.mxu0 %v430
    %814 = vmatpush.msra.mxu0 %v413
    %815 = vmatpush.msra.mxu0 %v396
    %816 = vmatpush.msra.mxu0 %v379
    %817 = vmatmul.f32.gmra.mxu0 %v474
    %v818 = vpop.f32.mrf.mxu0
    %v819 = vadd.f32 %v453, %v818
    %820 = vmatmul.f32.gmra.mxu0 %v477
    %v821 = vpop.f32.mrf.mxu0
    %v822 = vadd.f32 %v453, %v821
    %823 = vdwg.mxu0
    %824 = vmatpush.msra.mxu0 0.0
    %825 = vmatpush.msra.mxu0 0.0
    %826 = vmatpush.msra.mxu0 0.0
    %827 = vmatpush.msra.mxu0 0.0
    %828 = vmatpush.msra.mxu0 0.0
    %829 = vmatpush.msra.mxu0 0.0
    %830 = vmatpush.msra.mxu0 0.0
    %831 = vmatpush.msra.mxu0 0.0
    %832 = vmatpush.msra.mxu0 0.0
    %833 = vmatpush.msra.mxu0 0.0
    %834 = vmatpush.msra.mxu0 0.0
    %835 = vmatpush.msra.mxu0 0.0
    %836 = vmatpush.msra.mxu0 %v431
    %837 = vmatpush.msra.mxu0 %v414
    %838 = vmatpush.msra.mxu0 %v397
    %839 = vmatpush.msra.mxu0 %v380
    %840 = vmatmul.f32.gmra.mxu0 %v474
    %v841 = vpop.f32.mrf.mxu0
    %v842 = vadd.f32 %v454, %v841
    %843 = vmatmul.f32.gmra.mxu0 %v477
    %v844 = vpop.f32.mrf.mxu0
    %v845 = vadd.f32 %v454, %v844
    %846 = vdwg.mxu0
    %847 = vmatpush.msra.mxu0 0.0
    %848 = vmatpush.msra.mxu0 0.0
    %849 = vmatpush.msra.mxu0 0.0
    %850 = vmatpush.msra.mxu0 0.0
    %851 = vmatpush.msra.mxu0 0.0
    %852 = vmatpush.msra.mxu0 0.0
    %853 = vmatpush.msra.mxu0 0.0
    %854 = vmatpush.msra.mxu0 0.0
    %855 = vmatpush.msra.mxu0 0.0
    %856 = vmatpush.msra.mxu0 0.0
    %857 = vmatpush.msra.mxu0 0.0
    %858 = vmatpush.msra.mxu0 0.0
    %859 = vmatpush.msra.mxu0 %v432
    %860 = vmatpush.msra.mxu0 %v415
    %861 = vmatpush.msra.mxu0 %v398
    %862 = vmatpush.msra.mxu0 %v381
    %863 = vmatmul.f32.gmra.mxu0 %v474
    %v864 = vpop.f32.mrf.mxu0
    %v865 = vadd.f32 %v455, %v864
    %866 = vmatmul.f32.gmra.mxu0 %v477
    %v867 = vpop.f32.mrf.mxu0
    %v868 = vadd.f32 %v455, %v867
    %869 = vdwg.mxu0
    %v870 = vmax.f32 %v497, %v520
    %v871 = vmax.f32 %v500, %v523
    %v872 = vmax.f32 %v870, %v543
    %v873 = vmax.f32 %v871, %v546
    %v874 = vmax.f32 %v872, %v566
    %v875 = vmax.f32 %v873, %v569
    %v876 = vmax.f32 %v874, %v589
    %v877 = vmax.f32 %v875, %v592
    %v878 = vmax.f32 %v876, %v612
    %v879 = vmax.f32 %v877, %v615
    %v880 = vmax.f32 %v878, %v635
    %v881 = vmax.f32 %v879, %v638
    %v882 = vmax.f32 %v880, %v658
    %v883 = vmax.f32 %v881, %v661
    %v884 = vmax.f32 %v882, %v681
    %v885 = vmax.f32 %v883, %v684
    %v886 = vmax.f32 %v884, %v704
    %v887 = vmax.f32 %v885, %v707
    %v888 = vmax.f32 %v886, %v727
    %v889 = vmax.f32 %v887, %v730
    %v890 = vmax.f32 %v888, %v750
    %v891 = vmax.f32 %v889, %v753
    %v892 = vmax.f32 %v890, %v773
    %v893 = vmax.f32 %v891, %v776
    %v894 = vmax.f32 %v892, %v796
    %v895 = vmax.f32 %v893, %v799
    %v896 = vmax.f32 %v894, %v819
    %v897 = vmax.f32 %v895, %v822
    %v898 = vmax.f32 %v896, %v842
    %v899 = vmax.f32 %v897, %v845
    %v900 = vmax.f32 %v898, %v865
    %v901 = vmax.f32 %v899, %v868
    %v902 = vsub.f32 %v497, %v900
    %v903 = vsub.f32 %v500, %v901
    %v904 = vmul.f32 %v902, 1.442695
    %v905 = vpow.pop %v904
    %v906 = vmul.f32 %v903, 1.442695
    %v907 = vpow.pop %v906
    %v908 = vadd.f32 %v905, 0.0
    %v909 = vadd.f32 %v907, 0.0
    %vm910 = vcmp.eq.f32.partialorder %v78, 0.0
    %vm911 = vcmp.eq.f32.partialorder %v79, 0.0
    %v912 = vsel %vm910, %v497, 0.0
    %v913 = vsel %vm911, %v500, 0.0
    %v914 = vadd.f32 %v912, 0.0
    %v915 = vadd.f32 %v913, 0.0
    %v916 = vsub.f32 %v520, %v900
    %v917 = vsub.f32 %v523, %v901
    %v918 = vmul.f32 %v916, 1.442695
    %v919 = vpow.pop %v918
    %v920 = vmul.f32 %v917, 1.442695
    %v921 = vpow.pop %v920
    %v922 = vadd.f32 %v908, %v919
    %v923 = vadd.f32 %v909, %v921
    %vm924 = vcmp.eq.f32.partialorder %v78, 1.0
    %vm925 = vcmp.eq.f32.partialorder %v79, 1.0
    %v926 = vsel %vm924, %v520, 0.0
    %v927 = vsel %vm925, %v523, 0.0
    %v928 = vadd.f32 %v914, %v926
    %v929 = vadd.f32 %v915, %v927
    %v930 = vsub.f32 %v543, %v900
    %v931 = vsub.f32 %v546, %v901
    %v932 = vmul.f32 %v930, 1.442695
    %v933 = vpow.pop %v932
    %v934 = vmul.f32 %v931, 1.442695
    %v935 = vpow.pop %v934
    %v936 = vadd.f32 %v922, %v933
    %v937 = vadd.f32 %v923, %v935
    %vm938 = vcmp.eq.f32.partialorder %v78, 2.0
    %vm939 = vcmp.eq.f32.partialorder %v79, 2.0
    %v940 = vsel %vm938, %v543, 0.0
    %v941 = vsel %vm939, %v546, 0.0
    %v942 = vadd.f32 %v928, %v940
    %v943 = vadd.f32 %v929, %v941
    %v944 = vsub.f32 %v566, %v900
    %v945 = vsub.f32 %v569, %v901
    %v946 = vmul.f32 %v944, 1.442695
    %v947 = vpow.pop %v946
    %v948 = vmul.f32 %v945, 1.442695
    %v949 = vpow.pop %v948
    %v950 = vadd.f32 %v936, %v947
    %v951 = vadd.f32 %v937, %v949
    %vm952 = vcmp.eq.f32.partialorder %v78, 3.0
    %vm953 = vcmp.eq.f32.partialorder %v79, 3.0
    %v954 = vsel %vm952, %v566, 0.0
    %v955 = vsel %vm953, %v569, 0.0
    %v956 = vadd.f32 %v942, %v954
    %v957 = vadd.f32 %v943, %v955
    %v958 = vsub.f32 %v589, %v900
    %v959 = vsub.f32 %v592, %v901
    %v960 = vmul.f32 %v958, 1.442695
    %v961 = vpow.pop %v960
    %v962 = vmul.f32 %v959, 1.442695
    %v963 = vpow.pop %v962
    %v964 = vadd.f32 %v950, %v961
    %v965 = vadd.f32 %v951, %v963
    %vm966 = vcmp.eq.f32.partialorder %v78, 4.0
    %vm967 = vcmp.eq.f32.partialorder %v79, 4.0
    %v968 = vsel %vm966, %v589, 0.0
    %v969 = vsel %vm967, %v592, 0.0
    %v970 = vadd.f32 %v956, %v968
    %v971 = vadd.f32 %v957, %v969
    %v972 = vsub.f32 %v612, %v900
    %v973 = vsub.f32 %v615, %v901
    %v974 = vmul.f32 %v972, 1.442695
    %v975 = vpow.pop %v974
    %v976 = vmul.f32 %v973, 1.442695
    %v977 = vpow.pop %v976
    %v978 = vadd.f32 %v964, %v975
    %v979 = vadd.f32 %v965, %v977
    %vm980 = vcmp.eq.f32.partialorder %v78, 5.0
    %vm981 = vcmp.eq.f32.partialorder %v79, 5.0
    %v982 = vsel %vm980, %v612, 0.0
    %v983 = vsel %vm981, %v615, 0.0
    %v984 = vadd.f32 %v970, %v982
    %v985 = vadd.f32 %v971, %v983
    %v986 = vsub.f32 %v635, %v900
    %v987 = vsub.f32 %v638, %v901
    %v988 = vmul.f32 %v986, 1.442695
    %v989 = vpow.pop %v988
    %v990 = vmul.f32 %v987, 1.442695
    %v991 = vpow.pop %v990
    %v992 = vadd.f32 %v978, %v989
    %v993 = vadd.f32 %v979, %v991
    %vm994 = vcmp.eq.f32.partialorder %v78, 6.0
    %vm995 = vcmp.eq.f32.partialorder %v79, 6.0
    %v996 = vsel %vm994, %v635, 0.0
    %v997 = vsel %vm995, %v638, 0.0
    %v998 = vadd.f32 %v984, %v996
    %v999 = vadd.f32 %v985, %v997
    %v1000 = vsub.f32 %v658, %v900
    %v1001 = vsub.f32 %v661, %v901
    %v1002 = vmul.f32 %v1000, 1.442695
    %v1003 = vpow.pop %v1002
    %v1004 = vmul.f32 %v1001, 1.442695
    %v1005 = vpow.pop %v1004
    %v1006 = vadd.f32 %v992, %v1003
    %v1007 = vadd.f32 %v993, %v1005
    %vm1008 = vcmp.eq.f32.partialorder %v78, 7.0
    %vm1009 = vcmp.eq.f32.partialorder %v79, 7.0
    %v1010 = vsel %vm1008, %v658, 0.0
    %v1011 = vsel %vm1009, %v661, 0.0
    %v1012 = vadd.f32 %v998, %v1010
    %v1013 = vadd.f32 %v999, %v1011
    %v1014 = vsub.f32 %v681, %v900
    %v1015 = vsub.f32 %v684, %v901
    %v1016 = vmul.f32 %v1014, 1.442695
    %v1017 = vpow.pop %v1016
    %v1018 = vmul.f32 %v1015, 1.442695
    %v1019 = vpow.pop %v1018
    %v1020 = vadd.f32 %v1006, %v1017
    %v1021 = vadd.f32 %v1007, %v1019
    %vm1022 = vcmp.eq.f32.partialorder %v78, 8.0
    %vm1023 = vcmp.eq.f32.partialorder %v79, 8.0
    %v1024 = vsel %vm1022, %v681, 0.0
    %v1025 = vsel %vm1023, %v684, 0.0
    %v1026 = vadd.f32 %v1012, %v1024
    %v1027 = vadd.f32 %v1013, %v1025
    %v1028 = vsub.f32 %v704, %v900
    %v1029 = vsub.f32 %v707, %v901
    %v1030 = vmul.f32 %v1028, 1.442695
    %v1031 = vpow.pop %v1030
    %v1032 = vmul.f32 %v1029, 1.442695
    %v1033 = vpow.pop %v1032
    %v1034 = vadd.f32 %v1020, %v1031
    %v1035 = vadd.f32 %v1021, %v1033
    %vm1036 = vcmp.eq.f32.partialorder %v78, 9.0
    %vm1037 = vcmp.eq.f32.partialorder %v79, 9.0
    %v1038 = vsel %vm1036, %v704, 0.0
    %v1039 = vsel %vm1037, %v707, 0.0
    %v1040 = vadd.f32 %v1026, %v1038
    %v1041 = vadd.f32 %v1027, %v1039
    %v1042 = vsub.f32 %v727, %v900
    %v1043 = vsub.f32 %v730, %v901
    %v1044 = vmul.f32 %v1042, 1.442695
    %v1045 = vpow.pop %v1044
    %v1046 = vmul.f32 %v1043, 1.442695
    %v1047 = vpow.pop %v1046
    %v1048 = vadd.f32 %v1034, %v1045
    %v1049 = vadd.f32 %v1035, %v1047
    %vm1050 = vcmp.eq.f32.partialorder %v78, 10.0
    %vm1051 = vcmp.eq.f32.partialorder %v79, 10.0
    %v1052 = vsel %vm1050, %v727, 0.0
    %v1053 = vsel %vm1051, %v730, 0.0
    %v1054 = vadd.f32 %v1040, %v1052
    %v1055 = vadd.f32 %v1041, %v1053
    %v1056 = vsub.f32 %v750, %v900
    %v1057 = vsub.f32 %v753, %v901
    %v1058 = vmul.f32 %v1056, 1.442695
    %v1059 = vpow.pop %v1058
    %v1060 = vmul.f32 %v1057, 1.442695
    %v1061 = vpow.pop %v1060
    %v1062 = vadd.f32 %v1048, %v1059
    %v1063 = vadd.f32 %v1049, %v1061
    %vm1064 = vcmp.eq.f32.partialorder %v78, 11.0
    %vm1065 = vcmp.eq.f32.partialorder %v79, 11.0
    %v1066 = vsel %vm1064, %v750, 0.0
    %v1067 = vsel %vm1065, %v753, 0.0
    %v1068 = vadd.f32 %v1054, %v1066
    %v1069 = vadd.f32 %v1055, %v1067
    %v1070 = vsub.f32 %v773, %v900
    %v1071 = vsub.f32 %v776, %v901
    %v1072 = vmul.f32 %v1070, 1.442695
    %v1073 = vpow.pop %v1072
    %v1074 = vmul.f32 %v1071, 1.442695
    %v1075 = vpow.pop %v1074
    %v1076 = vadd.f32 %v1062, %v1073
    %v1077 = vadd.f32 %v1063, %v1075
    %vm1078 = vcmp.eq.f32.partialorder %v78, 12.0
    %vm1079 = vcmp.eq.f32.partialorder %v79, 12.0
    %v1080 = vsel %vm1078, %v773, 0.0
    %v1081 = vsel %vm1079, %v776, 0.0
    %v1082 = vadd.f32 %v1068, %v1080
    %v1083 = vadd.f32 %v1069, %v1081
    %v1084 = vsub.f32 %v796, %v900
    %v1085 = vsub.f32 %v799, %v901
    %v1086 = vmul.f32 %v1084, 1.442695
    %v1087 = vpow.pop %v1086
    %v1088 = vmul.f32 %v1085, 1.442695
    %v1089 = vpow.pop %v1088
    %v1090 = vadd.f32 %v1076, %v1087
    %v1091 = vadd.f32 %v1077, %v1089
    %vm1092 = vcmp.eq.f32.partialorder %v78, 13.0
    %vm1093 = vcmp.eq.f32.partialorder %v79, 13.0
    %v1094 = vsel %vm1092, %v796, 0.0
    %v1095 = vsel %vm1093, %v799, 0.0
    %v1096 = vadd.f32 %v1082, %v1094
    %v1097 = vadd.f32 %v1083, %v1095
    %v1098 = vsub.f32 %v819, %v900
    %v1099 = vsub.f32 %v822, %v901
    %v1100 = vmul.f32 %v1098, 1.442695
    %v1101 = vpow.pop %v1100
    %v1102 = vmul.f32 %v1099, 1.442695
    %v1103 = vpow.pop %v1102
    %v1104 = vadd.f32 %v1090, %v1101
    %v1105 = vadd.f32 %v1091, %v1103
    %vm1106 = vcmp.eq.f32.partialorder %v78, 14.0
    %vm1107 = vcmp.eq.f32.partialorder %v79, 14.0
    %v1108 = vsel %vm1106, %v819, 0.0
    %v1109 = vsel %vm1107, %v822, 0.0
    %v1110 = vadd.f32 %v1096, %v1108
    %v1111 = vadd.f32 %v1097, %v1109
    %v1112 = vsub.f32 %v842, %v900
    %v1113 = vsub.f32 %v845, %v901
    %v1114 = vmul.f32 %v1112, 1.442695
    %v1115 = vpow.pop %v1114
    %v1116 = vmul.f32 %v1113, 1.442695
    %v1117 = vpow.pop %v1116
    %v1118 = vadd.f32 %v1104, %v1115
    %v1119 = vadd.f32 %v1105, %v1117
    %vm1120 = vcmp.eq.f32.partialorder %v78, 15.0
    %vm1121 = vcmp.eq.f32.partialorder %v79, 15.0
    %v1122 = vsel %vm1120, %v842, 0.0
    %v1123 = vsel %vm1121, %v845, 0.0
    %v1124 = vadd.f32 %v1110, %v1122
    %v1125 = vadd.f32 %v1111, %v1123
    %v1126 = vsub.f32 %v865, %v900
    %v1127 = vsub.f32 %v868, %v901
    %v1128 = vmul.f32 %v1126, 1.442695
    %v1129 = vpow.pop %v1128
    %v1130 = vmul.f32 %v1127, 1.442695
    %v1131 = vpow.pop %v1130
    %v1132 = vadd.f32 %v1118, %v1129
    %v1133 = vadd.f32 %v1119, %v1131
    %vm1134 = vcmp.eq.f32.partialorder %v78, 16.0
    %vm1135 = vcmp.eq.f32.partialorder %v79, 16.0
    %v1136 = vsel %vm1134, %v865, 0.0
    %v1137 = vsel %vm1135, %v868, 0.0
    %v1138 = vadd.f32 %v1124, %v1136
    %v1139 = vadd.f32 %v1125, %v1137
    %v1140 = vsub.f32 %v1138, %v900
    %v1141 = vsub.f32 %v1139, %v901
    %v1142 = vlog2.pop %v1132
    %v1143 = vmul.f32 %v1142, 0.6931472
    %v1144 = vlog2.pop %v1133
    %v1145 = vmul.f32 %v1144, 0.6931472
    %v1146 = vsub.f32 %v1140, %v1143
    %v1147 = vsub.f32 %v1141, %v1145
    %v1148 = vmax.f32 %v1146, -27.631021
    %v1149 = vmax.f32 %v1147, -27.631021
    %vm1150 = vcmp.ge.f32.partialorder %v78, 0.0
    %vm1151 = vcmp.ge.f32.partialorder %v79, 0.0
    %v1152 = vsel %vm1150, 1, 0
    %v1153 = vsel %vm1151, 1, 0
    %v1154 = vcvt.s32.f32 %v1152
    %v1155 = vcvt.s32.f32 %v1153
    %v1156 = vmul.f32 %v1154, %v1148
    %v1157 = vmul.f32 %v1155, %v1149
    %1158 = vadd.xlane.f32.xlu0 %v1156
    %v1159 = vpop.xlane.xlu0 %1158
    %1160 = vadd.xlane.f32.xlu0 %v1157
    %v1161 = vpop.xlane.xlu0 %1160
    %v1162 = vlaneseq
    %v1163 = vand.u32 %v1162, 127
    %vm1164 = vcmp.eq.s32.totalorder %v1163, 0
    %vm1165 = vcmp.eq.s32.totalorder %v1163, 1
    %vm1166 = vcmp.eq.s32.totalorder %v1163, 2
    %v1167 = vsel %vm1166, %v279, 0.0
    %v1168 = vsel %vm1166, %v280, 0.0
    %v1169 = vsel %vm1165, %v1159, %v1167
    %v1170 = vsel %vm1165, %v1161, %v1168
    %v1171 = vsel %vm1164, %v267, %v1169
    %v1172 = vsel %vm1164, %v268, %v1170
    %1173 = vst [vmem:[#allocation7] sm:$0xff] %v1171
    %1174 = vst [vmem:[#allocation7 + $0x8] sm:$0xff] %v1172
    // Predicated region
    $region66: #{tpu_custom_call.1} parent=1 // pred_check
      _
    $region67: #{tpu_custom_call.1} parent=1 // pred_check_branch
      %1176 = sbr.rel (0) target = $region69
    $region68: #{tpu_custom_call.1} parent=1 // pred_region
      %1178 = vsyncadd [#allocation4], 0
      %s1179 = sshll.u32 [#allocation7], 4
      %s1180 = int_to_ptr.vmem [resolvable:$true] %s1179
      %s1181 = sshll.u32 %s14, 4
      %s1182 = int_to_ptr.hbm [resolvable:$true] %s1181
      %1187 = dma.vmem_to_hbm [thread:$0]  %s1180, 256, %s1182, [#allocation4], 128, 128, 8
    $region69: #{tpu_custom_call.1} parent=1 // pred_fallthru
      _
    // Predicated region
    $region70: #{tpu_custom_call.1} parent=1 // pred_check
      _
    $region71: #{tpu_custom_call.1} parent=1 // pred_check_branch
      %1189 = sbr.rel (0) target = $region73
    $region72: #{tpu_custom_call.1} parent=1 // pred_region
      %1191 = dma.done [#allocation4], 256
    $region73: #{tpu_custom_call.1} parent=1 // pred_fallthru
      _
    %1192 = vsyncpa [#allocation3], 1
    %1193 = vsyncpa [#allocation6], 1
    %1194 = vsyncpa [#allocation4], 1

</llo_original>
